<compile_context>
chip_gen: v6e
topology: v6e:2x2x1
jax: 0.10.0
libtpu: 0.0.40
codegen_flags: <defaults>
</compile_context>

<pallas_src>
import functools
import math

import jax
import jax.numpy as jnp
import numpy as np
from jax import lax
from jax.experimental import pallas as pl
from jax.experimental.pallas import tpu as pltpu


# --------------------------------------------------------------------------- #
# Helpers
# --------------------------------------------------------------------------- #
def _vmem_limit_bytes():
    """Per-generation VMEM limit (~3/4 of physical capacity).

    v5e/v6e: 128 MiB -> 96 MiB,  v7x: 64 MiB -> 48 MiB.  This is a host-side
    capability probe only; it never masks kernel errors.
    """
    cap = None
    if hasattr(pltpu, "get_tpu_info"):
        try:
            cap = int(pltpu.get_tpu_info().vmem_capacity_bytes)
        except Exception:
            cap = None
    if not cap:
        cap = 64 * 1024 * 1024  # conservative (v7x-sized) default
    return int(max(32 * 1024 * 1024, (cap * 3) // 4))


def _pick_head_group(C, hs, n_head, budget_bytes):
    """Heads per qkv grid step so the bf16 weight block stays under budget."""
    per_head = 3 * C * hs * 2  # bf16 bytes of (q,k,v) weight for one head
    g = max(1, min(n_head, budget_bytes // max(per_head, 1)))
    while n_head % g:
        g -= 1
    return int(g)


# --------------------------------------------------------------------------- #
# Kernels
# --------------------------------------------------------------------------- #
def _qkv_proj_kernel(x_ref, w_ref, b_ref, q_ref, k_ref, v_ref):
    """Per head of the current group: {q,k,v}[h] = relu(x @ W[h] + b[h]).

    The 1/sqrt(hs) attention scale is already folded into the q weight/bias.
    Each head slice is written immediately after its bias+relu (no (bm, 3C)
    f32 intermediate).
    """
    x = x_ref[0]                                   # (block_m, C) bf16
    G = q_ref.shape[1]                             # heads in this group
    out_refs = (q_ref, k_ref, v_ref)
    for j in range(3):                             # q, k, v
        for g in range(G):
            h = jnp.dot(x, w_ref[j, g], preferred_element_type=jnp.float32)
            h = jnp.maximum(h + b_ref[j, g], 0.0)  # bias + relu in f32
            out_refs[j][0, g] = h.astype(out_refs[j].dtype)


def _attn_kernel(q_ref, k_ref, v_ref, o_ref, acc_ref, *, block_q, block_kv):
    """Causal relu-attention for one (batch, head, q_block).

    K/V refs hold the whole (T, hs) row for this (b, h); the kv reduction is
    an in-kernel loop bounded at the causal diagonal, so masked tiles are
    never touched.  No softmax => kv-tile contributions are additive.
    """
    qi = pl.program_id(2)
    q = q_ref[0, 0]                                # (block_q, hs) bf16 (scaled)
    acc_ref[...] = jnp.zeros_like(acc_ref)

    def _score(kv_idx):
        start = pl.multiple_of(kv_idx * block_kv, block_kv)
        k_t = k_ref[0, 0, pl.ds(start, block_kv), :]          # (block_kv, hs)
        v_t = v_ref[0, 0, pl.ds(start, block_kv), :]
        # NT-form matmul: contract the head dim of both operands (no k.T).
        s = lax.dot_general(q, k_t, (((1,), (1,)), ((), ())),
                            preferred_element_type=jnp.float32)  # (bq, bkv)
        return jnp.maximum(s, 0.0), v_t            # F.relu on scores

    # Strictly-lower (fully unmasked) kv tiles: 0 .. qi-1.
    def _lower(kv_idx, carry):
        s, v_t = _score(kv_idx)
        acc_ref[...] += jnp.dot(s.astype(v_t.dtype), v_t,
                                preferred_element_type=jnp.float32)
        return carry

    lax.fori_loop(0, qi, _lower, 0)

    # Diagonal tile (kv == qi): the only partially-masked tile.  Masking with
    # 0 is equivalent to -inf-then-relu since relu has already been applied.
    s, v_t = _score(qi)
    row = lax.broadcasted_iota(jnp.int32, s.shape, 0)
    col = lax.broadcasted_iota(jnp.int32, s.shape, 1)
    s = jnp.where(col <= row, s, 0.0)
    acc = acc_ref[...] + jnp.dot(s.astype(v_t.dtype), v_t,
                                 preferred_element_type=jnp.float32)
    o_ref[0, 0] = acc.astype(o_ref.dtype)


def _out_proj_kernel(y_ref, w_ref, b_ref, o_ref):
    """out = sum_h y[h] @ W[h] + b, consuming head-major y (no relayout)."""
    H = y_ref.shape[1]
    acc = jnp.dot(y_ref[0, 0], w_ref[0], preferred_element_type=jnp.float32)
    for h in range(1, H):
        acc += jnp.dot(y_ref[0, h], w_ref[h], preferred_element_type=jnp.float32)
    o_ref[0] = (acc + b_ref[...]).astype(o_ref.dtype)


# --------------------------------------------------------------------------- #
# pallas_call wrappers
# --------------------------------------------------------------------------- #
def _qkv_proj(x, w_qkv, b_qkv, *, block_m, head_group, vmem_limit):
    B, T, C = x.shape
    _, H, _, hs = w_qkv.shape
    G = head_group
    out_spec = pl.BlockSpec((1, G, block_m, hs), lambda b, i, g: (b, g, i, 0))
    return pl.pallas_call(
        _qkv_proj_kernel,
        out_shape=tuple(jax.ShapeDtypeStruct((B, H, T, hs), x.dtype)
                        for _ in range(3)),
        grid_spec=pltpu.PrefetchScalarGridSpec(
            num_scalar_prefetch=0,
            grid=(B, T // block_m, H // G),
            in_specs=[
                # x block is constant over the head-group axis -> fetched once
                # per (b, i).
                pl.BlockSpec((1, block_m, C), lambda b, i, g: (b, i, 0)),
                pl.BlockSpec((3, G, C, hs), lambda b, i, g: (0, g, 0, 0)),
                pl.BlockSpec((3, G, 1, hs), lambda b, i, g: (0, g, 0, 0)),
            ],
            out_specs=(out_spec, out_spec, out_spec),
        ),
        compiler_params=pltpu.CompilerParams(
            dimension_semantics=("parallel", "parallel", "arbitrary"),
            vmem_limit_bytes=vmem_limit),
    )(x, w_qkv, b_qkv)


def _flash_relu_attention(q4, k4, v4, *, block_q, block_kv, vmem_limit):
    B, H, T, hs = q4.shape
    kernel = functools.partial(_attn_kernel, block_q=block_q, block_kv=block_kv)
    q_spec = pl.BlockSpec((1, 1, block_q, hs), lambda b, h, qi: (b, h, qi, 0))
    # Whole per-(b,h) K and V resident; index constant over qi -> DMA'd once
    # per (b, h); no masked-tile DMA waste.
    kv_spec = pl.BlockSpec((1, 1, T, hs), lambda b, h, qi: (b, h, 0, 0))
    return pl.pallas_call(
        kernel,
        out_shape=jax.ShapeDtypeStruct((B, H, T, hs), q4.dtype),
        grid_spec=pltpu.PrefetchScalarGridSpec(
            num_scalar_prefetch=0,
            grid=(B, H, T // block_q),
            in_specs=[q_spec, kv_spec, kv_spec],
            out_specs=q_spec,
            scratch_shapes=[pltpu.VMEM((block_q, hs), jnp.float32)],
        ),
        compiler_params=pltpu.CompilerParams(
            dimension_semantics=("parallel", "parallel", "arbitrary"),
            vmem_limit_bytes=vmem_limit),
    )(q4, k4, v4)


def _out_proj(y4, w_o, b_o, *, block_m, out_dtype, vmem_limit):
    B, H, T, hs = y4.shape
    C = w_o.shape[-1]
    return pl.pallas_call(
        _out_proj_kernel,
        out_shape=jax.ShapeDtypeStruct((B, T, C), out_dtype),
        grid_spec=pltpu.PrefetchScalarGridSpec(
            num_scalar_prefetch=0,
            grid=(B, T // block_m),
            in_specs=[
                pl.BlockSpec((1, H, block_m, hs), lambda b, i: (b, 0, i, 0)),
                pl.BlockSpec((H, hs, C), lambda b, i: (0, 0, 0)),
                pl.BlockSpec((1, C), lambda b, i: (0, 0)),
            ],
            out_specs=pl.BlockSpec((1, block_m, C), lambda b, i: (b, i, 0)),
        ),
        compiler_params=pltpu.CompilerParams(
            dimension_semantics=("parallel", "parallel"),
            vmem_limit_bytes=vmem_limit),
    )(y4, w_o, b_o)


# --------------------------------------------------------------------------- #
# Public forward
# --------------------------------------------------------------------------- #
def causal_self_attention(x, w_attn, b_attn, w_proj, b_proj, *, n_head,
                          block_m=512, block_q=256, block_kv=256,
                          compute_dtype=jnp.bfloat16,
                          qkv_weight_budget_bytes=8 * 1024 * 1024):
    """x: (B, T, C). w_attn: (3C, C), b_attn: (3C,), w_proj: (C, C), b_proj: (C,)."""
    B, T, C = x.shape
    assert C % n_head == 0
    H = n_head
    hs = C // H

    block_m = min(block_m, T)
    block_q = min(block_q, T)
    block_kv = min(block_kv, T)
    assert T % block_m == 0 and T % block_q == 0 and T % block_kv == 0
    # In-kernel diagonal masking assumes square attention tiles.
    assert block_q == block_kv

    vmem_limit = _vmem_limit_bytes()
    G = _pick_head_group(C, hs, H, qkv_weight_budget_bytes)

    # --- host-side weight prep (once, outside kernels) -------------------- #
    # Transpose to (in, out), split per head, fold the 1/sqrt(hs) attention
    # scale into the q weight/bias (valid since relu(a*x) = a*relu(x), a > 0),
    # cast matmul operands to bf16, keep biases in f32.
    scale = 1.0 / math.sqrt(hs)
    w_r = w_attn.T.astype(jnp.float32).reshape(C, 3, H, hs).transpose(1, 2, 0, 3)
    w_r = w_r.at[0].multiply(scale)                 # (3, H, C, hs), q scaled
    w_r = w_r.astype(compute_dtype)
    b_r = b_attn.astype(jnp.float32).reshape(3, H, 1, hs)
    b_r = b_r.at[0].multiply(scale)                 # (3, H, 1, hs), f32
    w_o = w_proj.T.astype(compute_dtype).reshape(H, hs, C)   # (H, hs, C)
    b_o = b_proj.astype(jnp.float32).reshape(1, C)
    x_c = x.astype(compute_dtype)

    q4, k4, v4 = _qkv_proj(x_c, w_r, b_r, block_m=block_m, head_group=G,
                           vmem_limit=vmem_limit)
    y4 = _flash_relu_attention(q4, k4, v4, block_q=block_q, block_kv=block_kv,
                               vmem_limit=vmem_limit)
    return _out_proj(y4, w_o, b_o, block_m=block_m, out_dtype=x.dtype,
                     vmem_limit=vmem_limit)


# --------------------------------------------------------------------------- #
# Pure-JAX reference (mirrors the PyTorch forward, eval mode, f32)
# --------------------------------------------------------------------------- #
def ref_causal_self_attention(x, w_attn, b_attn, w_proj, b_proj, *, n_head):
    B, T, C = x.shape
    hs = C // n_head
    qkv = x @ w_attn.T + b_attn
    q, k, v = jnp.split(qkv, 3, axis=-1)
    q, k, v = jax.nn.relu(q), jax.nn.relu(k), jax.nn.relu(v)
    q = q.reshape(B, T, n_head, hs).transpose(0, 2, 1, 3)
    k = k.reshape(B, T, n_head, hs).transpose(0, 2, 1, 3)
    v = v.reshape(B, T, n_head, hs).transpose(0, 2, 1, 3)
    att = (q @ jnp.swapaxes(k, -2, -1)) * (1.0 / math.sqrt(hs))
    mask = jnp.tril(jnp.ones((T, T), dtype=x.dtype))
    att = jnp.where(mask == 0, -jnp.inf, att)
    att = jax.nn.relu(att)
    y = att @ v
    y = y.transpose(0, 2, 1, 3).reshape(B, T, C)
    return y @ w_proj.T + b_proj


if __name__ == "__main__":
    # Small config that still exercises multi-tile causal attention (2 q tiles
    # -> the in-kernel kv loop runs), multi-row-block projections, and a
    # lane-dense head_dim of 128:  T = 256, C = 256, n_head = 2.
    B, T, C, n_head = 2, 256, 256, 2

    key = jax.random.PRNGKey(0)
    kx, kw1, kb1, kw2, kb2 = jax.random.split(key, 5)
    x = jax.random.normal(kx, (B, T, C), dtype=jnp.float32)
    w_attn = 0.02 * jax.random.normal(kw1, (3 * C, C), dtype=jnp.float32)
    b_attn = 0.02 * jax.random.normal(kb1, (3 * C,), dtype=jnp.float32)
    w_proj = 0.02 * jax.random.normal(kw2, (C, C), dtype=jnp.float32)
    b_proj = 0.02 * jax.random.normal(kb2, (C,), dtype=jnp.float32)

    out = causal_self_attention(x, w_attn, b_attn, w_proj, b_proj,
                                n_head=n_head,
                                block_m=128, block_q=128, block_kv=128)
    out = jax.block_until_ready(out)

    ref = ref_causal_self_attention(x, w_attn, b_attn, w_proj, b_proj,
                                    n_head=n_head)
    # bf16 MXU operands with f32 accumulation over long (T=256) relu-attention
    # sums -> bf16-level tolerances.
    np.testing.assert_allclose(np.asarray(out, dtype=np.float32),
                               np.asarray(ref, dtype=np.float32),
                               rtol=5e-2, atol=5e-2)
    print("KERNEL_OK")
</pallas_src>

<mosaic_0001>
module attributes {stable_mosaic.version = 11 : i64} {
  func.func @_qkv_proj_kernel(%arg0: i32, %arg1: i32, %arg2: i32, %arg3: memref<1x128x256xbf16, #tpu.memory_space<vmem>>, %arg4: memref<3x2x256x128xbf16, #tpu.memory_space<vmem>>, %arg5: memref<3x2x1x128xf32, #tpu.memory_space<vmem>>, %arg6: memref<1x2x128x128xbf16, #tpu.memory_space<vmem>>, %arg7: memref<1x2x128x128xbf16, #tpu.memory_space<vmem>>, %arg8: memref<1x2x128x128xbf16, #tpu.memory_space<vmem>>) attributes {dimension_semantics = [#tpu.dimension_semantics<parallel>, #tpu.dimension_semantics<parallel>, #tpu.dimension_semantics<arbitrary>], iteration_bounds = array<i64: 2, 2, 1>, scalar_prefetch = 0 : i64, scratch_operands = 0 : i64, tpu.core_type = #tpu.core_type<tc>, window_params = [{transform_indices = @transform_0, window_bounds = array<i64: 1, 128, 256>}, {transform_indices = @transform_1, window_bounds = array<i64: 3, 2, 256, 128>}, {transform_indices = @transform_2, window_bounds = array<i64: 3, 2, 1, 128>}, {transform_indices = @transform_3, window_bounds = array<i64: 1, 2, 128, 128>}, {transform_indices = @transform_4, window_bounds = array<i64: 1, 2, 128, 128>}, {transform_indices = @transform_5, window_bounds = array<i64: 1, 2, 128, 128>}]} {
    %c0 = arith.constant 0 : index
    %c0_0 = arith.constant 0 : index
    %c0_1 = arith.constant 0 : index
    %0 = vector.load %arg3[%c0, %c0_0, %c0_1] : memref<1x128x256xbf16, #tpu.memory_space<vmem>>, vector<1x128x256xbf16>
    %1 = vector.shape_cast %0 : vector<1x128x256xbf16> to vector<128x256xbf16>
    %c0_2 = arith.constant 0 : index
    %c0_3 = arith.constant 0 : index
    %c0_4 = arith.constant 0 : index
    %c0_5 = arith.constant 0 : index
    %2 = vector.load %arg4[%c0_2, %c0_3, %c0_4, %c0_5] : memref<3x2x256x128xbf16, #tpu.memory_space<vmem>>, vector<1x1x256x128xbf16>
    %3 = vector.shape_cast %2 : vector<1x1x256x128xbf16> to vector<256x128xbf16>
    %cst = arith.constant dense<0.000000e+00> : vector<128x128xf32>
    %4 = tpu.matmul %1, %3, %cst {dimension_numbers = #tpu.dot_dimension_numbers<[1], [0], [0], [1], [0, 0, 1, 1], [], []>} : vector<128x256xbf16>, vector<256x128xbf16>, vector<128x128xf32> -> vector<128x128xf32>
    %c0_6 = arith.constant 0 : index
    %c0_7 = arith.constant 0 : index
    %c0_8 = arith.constant 0 : index
    %c0_9 = arith.constant 0 : index
    %5 = vector.load %arg5[%c0_6, %c0_7, %c0_8, %c0_9] : memref<3x2x1x128xf32, #tpu.memory_space<vmem>>, vector<1x1x1x128xf32>
    %6 = vector.shape_cast %5 : vector<1x1x1x128xf32> to vector<1x128xf32>
    %7 = vector.broadcast %6 : vector<1x128xf32> to vector<128x128xf32>
    %8 = arith.addf %4, %7 : vector<128x128xf32>
    %cst_10 = arith.constant 0.000000e+00 : f32
    %9 = vector.broadcast %cst_10 : f32 to vector<128x128xf32>
    %10 = arith.maximumf %8, %9 : vector<128x128xf32>
    %11 = arith.truncf %10 : vector<128x128xf32> to vector<128x128xbf16>
    %c0_11 = arith.constant 0 : index
    %c0_12 = arith.constant 0 : index
    %c0_13 = arith.constant 0 : index
    %c0_14 = arith.constant 0 : index
    %12 = vector.load %arg6[%c0_11, %c0_12, %c0_13, %c0_14] : memref<1x2x128x128xbf16, #tpu.memory_space<vmem>>, vector<1x1x128x128xbf16>
    %13 = vector.shape_cast %12 : vector<1x1x128x128xbf16> to vector<128x128xbf16>
    %14 = vector.shape_cast %11 : vector<128x128xbf16> to vector<1x1x128x128xbf16>
    tpu.vector_store %arg6[%c0_11, %c0_12, %c0_13, %c0_14], %14 {strides = array<i32>} : memref<1x2x128x128xbf16, #tpu.memory_space<vmem>>, vector<1x1x128x128xbf16>,
    %c0_15 = arith.constant 0 : index
    %c1 = arith.constant 1 : index
    %c0_16 = arith.constant 0 : index
    %c0_17 = arith.constant 0 : index
    %15 = vector.load %arg4[%c0_15, %c1, %c0_16, %c0_17] : memref<3x2x256x128xbf16, #tpu.memory_space<vmem>>, vector<1x1x256x128xbf16>
    %16 = vector.shape_cast %15 : vector<1x1x256x128xbf16> to vector<256x128xbf16>
    %cst_18 = arith.constant dense<0.000000e+00> : vector<128x128xf32>
    %17 = tpu.matmul %1, %16, %cst_18 {dimension_numbers = #tpu.dot_dimension_numbers<[1], [0], [0], [1], [0, 0, 1, 1], [], []>} : vector<128x256xbf16>, vector<256x128xbf16>, vector<128x128xf32> -> vector<128x128xf32>
    %c0_19 = arith.constant 0 : index
    %c1_20 = arith.constant 1 : index
    %c0_21 = arith.constant 0 : index
    %c0_22 = arith.constant 0 : index
    %18 = vector.load %arg5[%c0_19, %c1_20, %c0_21, %c0_22] : memref<3x2x1x128xf32, #tpu.memory_space<vmem>>, vector<1x1x1x128xf32>
    %19 = vector.shape_cast %18 : vector<1x1x1x128xf32> to vector<1x128xf32>
    %20 = vector.broadcast %19 : vector<1x128xf32> to vector<128x128xf32>
    %21 = arith.addf %17, %20 : vector<128x128xf32>
    %cst_23 = arith.constant 0.000000e+00 : f32
    %22 = vector.broadcast %cst_23 : f32 to vector<128x128xf32>
    %23 = arith.maximumf %21, %22 : vector<128x128xf32>
    %24 = arith.truncf %23 : vector<128x128xf32> to vector<128x128xbf16>
    %c0_24 = arith.constant 0 : index
    %c1_25 = arith.constant 1 : index
    %c0_26 = arith.constant 0 : index
    %c0_27 = arith.constant 0 : index
    %25 = vector.load %arg6[%c0_24, %c1_25, %c0_26, %c0_27] : memref<1x2x128x128xbf16, #tpu.memory_space<vmem>>, vector<1x1x128x128xbf16>
    %26 = vector.shape_cast %25 : vector<1x1x128x128xbf16> to vector<128x128xbf16>
    %27 = vector.shape_cast %24 : vector<128x128xbf16> to vector<1x1x128x128xbf16>
    tpu.vector_store %arg6[%c0_24, %c1_25, %c0_26, %c0_27], %27 {strides = array<i32>} : memref<1x2x128x128xbf16, #tpu.memory_space<vmem>>, vector<1x1x128x128xbf16>,
    %c1_28 = arith.constant 1 : index
    %c0_29 = arith.constant 0 : index
    %c0_30 = arith.constant 0 : index
    %c0_31 = arith.constant 0 : index
    %28 = vector.load %arg4[%c1_28, %c0_29, %c0_30, %c0_31] : memref<3x2x256x128xbf16, #tpu.memory_space<vmem>>, vector<1x1x256x128xbf16>
    %29 = vector.shape_cast %28 : vector<1x1x256x128xbf16> to vector<256x128xbf16>
    %cst_32 = arith.constant dense<0.000000e+00> : vector<128x128xf32>
    %30 = tpu.matmul %1, %29, %cst_32 {dimension_numbers = #tpu.dot_dimension_numbers<[1], [0], [0], [1], [0, 0, 1, 1], [], []>} : vector<128x256xbf16>, vector<256x128xbf16>, vector<128x128xf32> -> vector<128x128xf32>
    %c1_33 = arith.constant 1 : index
    %c0_34 = arith.constant 0 : index
    %c0_35 = arith.constant 0 : index
    %c0_36 = arith.constant 0 : index
    %31 = vector.load %arg5[%c1_33, %c0_34, %c0_35, %c0_36] : memref<3x2x1x128xf32, #tpu.memory_space<vmem>>, vector<1x1x1x128xf32>
    %32 = vector.shape_cast %31 : vector<1x1x1x128xf32> to vector<1x128xf32>
    %33 = vector.broadcast %32 : vector<1x128xf32> to vector<128x128xf32>
    %34 = arith.addf %30, %33 : vector<128x128xf32>
    %cst_37 = arith.constant 0.000000e+00 : f32
    %35 = vector.broadcast %cst_37 : f32 to vector<128x128xf32>
    %36 = arith.maximumf %34, %35 : vector<128x128xf32>
    %37 = arith.truncf %36 : vector<128x128xf32> to vector<128x128xbf16>
    %c0_38 = arith.constant 0 : index
    %c0_39 = arith.constant 0 : index
    %c0_40 = arith.constant 0 : index
    %c0_41 = arith.constant 0 : index
    %38 = vector.load %arg7[%c0_38, %c0_39, %c0_40, %c0_41] : memref<1x2x128x128xbf16, #tpu.memory_space<vmem>>, vector<1x1x128x128xbf16>
    %39 = vector.shape_cast %38 : vector<1x1x128x128xbf16> to vector<128x128xbf16>
    %40 = vector.shape_cast %37 : vector<128x128xbf16> to vector<1x1x128x128xbf16>
    tpu.vector_store %arg7[%c0_38, %c0_39, %c0_40, %c0_41], %40 {strides = array<i32>} : memref<1x2x128x128xbf16, #tpu.memory_space<vmem>>, vector<1x1x128x128xbf16>,
    %c1_42 = arith.constant 1 : index
    %c1_43 = arith.constant 1 : index
    %c0_44 = arith.constant 0 : index
    %c0_45 = arith.constant 0 : index
    %41 = vector.load %arg4[%c1_42, %c1_43, %c0_44, %c0_45] : memref<3x2x256x128xbf16, #tpu.memory_space<vmem>>, vector<1x1x256x128xbf16>
    %42 = vector.shape_cast %41 : vector<1x1x256x128xbf16> to vector<256x128xbf16>
    %cst_46 = arith.constant dense<0.000000e+00> : vector<128x128xf32>
    %43 = tpu.matmul %1, %42, %cst_46 {dimension_numbers = #tpu.dot_dimension_numbers<[1], [0], [0], [1], [0, 0, 1, 1], [], []>} : vector<128x256xbf16>, vector<256x128xbf16>, vector<128x128xf32> -> vector<128x128xf32>
    %c1_47 = arith.constant 1 : index
    %c1_48 = arith.constant 1 : index
    %c0_49 = arith.constant 0 : index
    %c0_50 = arith.constant 0 : index
    %44 = vector.load %arg5[%c1_47, %c1_48, %c0_49, %c0_50] : memref<3x2x1x128xf32, #tpu.memory_space<vmem>>, vector<1x1x1x128xf32>
    %45 = vector.shape_cast %44 : vector<1x1x1x128xf32> to vector<1x128xf32>
    %46 = vector.broadcast %45 : vector<1x128xf32> to vector<128x128xf32>
    %47 = arith.addf %43, %46 : vector<128x128xf32>
    %cst_51 = arith.constant 0.000000e+00 : f32
    %48 = vector.broadcast %cst_51 : f32 to vector<128x128xf32>
    %49 = arith.maximumf %47, %48 : vector<128x128xf32>
    %50 = arith.truncf %49 : vector<128x128xf32> to vector<128x128xbf16>
    %c0_52 = arith.constant 0 : index
    %c1_53 = arith.constant 1 : index
    %c0_54 = arith.constant 0 : index
    %c0_55 = arith.constant 0 : index
    %51 = vector.load %arg7[%c0_52, %c1_53, %c0_54, %c0_55] : memref<1x2x128x128xbf16, #tpu.memory_space<vmem>>, vector<1x1x128x128xbf16>
    %52 = vector.shape_cast %51 : vector<1x1x128x128xbf16> to vector<128x128xbf16>
    %53 = vector.shape_cast %50 : vector<128x128xbf16> to vector<1x1x128x128xbf16>
    tpu.vector_store %arg7[%c0_52, %c1_53, %c0_54, %c0_55], %53 {strides = array<i32>} : memref<1x2x128x128xbf16, #tpu.memory_space<vmem>>, vector<1x1x128x128xbf16>,
    %c2 = arith.constant 2 : index
    %c0_56 = arith.constant 0 : index
    %c0_57 = arith.constant 0 : index
    %c0_58 = arith.constant 0 : index
    %54 = vector.load %arg4[%c2, %c0_56, %c0_57, %c0_58] : memref<3x2x256x128xbf16, #tpu.memory_space<vmem>>, vector<1x1x256x128xbf16>
    %55 = vector.shape_cast %54 : vector<1x1x256x128xbf16> to vector<256x128xbf16>
    %cst_59 = arith.constant dense<0.000000e+00> : vector<128x128xf32>
    %56 = tpu.matmul %1, %55, %cst_59 {dimension_numbers = #tpu.dot_dimension_numbers<[1], [0], [0], [1], [0, 0, 1, 1], [], []>} : vector<128x256xbf16>, vector<256x128xbf16>, vector<128x128xf32> -> vector<128x128xf32>
    %c2_60 = arith.constant 2 : index
    %c0_61 = arith.constant 0 : index
    %c0_62 = arith.constant 0 : index
    %c0_63 = arith.constant 0 : index
    %57 = vector.load %arg5[%c2_60, %c0_61, %c0_62, %c0_63] : memref<3x2x1x128xf32, #tpu.memory_space<vmem>>, vector<1x1x1x128xf32>
    %58 = vector.shape_cast %57 : vector<1x1x1x128xf32> to vector<1x128xf32>
    %59 = vector.broadcast %58 : vector<1x128xf32> to vector<128x128xf32>
    %60 = arith.addf %56, %59 : vector<128x128xf32>
    %cst_64 = arith.constant 0.000000e+00 : f32
    %61 = vector.broadcast %cst_64 : f32 to vector<128x128xf32>
    %62 = arith.maximumf %60, %61 : vector<128x128xf32>
    %63 = arith.truncf %62 : vector<128x128xf32> to vector<128x128xbf16>
    %c0_65 = arith.constant 0 : index
    %c0_66 = arith.constant 0 : index
    %c0_67 = arith.constant 0 : index
    %c0_68 = arith.constant 0 : index
    %64 = vector.load %arg8[%c0_65, %c0_66, %c0_67, %c0_68] : memref<1x2x128x128xbf16, #tpu.memory_space<vmem>>, vector<1x1x128x128xbf16>
    %65 = vector.shape_cast %64 : vector<1x1x128x128xbf16> to vector<128x128xbf16>
    %66 = vector.shape_cast %63 : vector<128x128xbf16> to vector<1x1x128x128xbf16>
    tpu.vector_store %arg8[%c0_65, %c0_66, %c0_67, %c0_68], %66 {strides = array<i32>} : memref<1x2x128x128xbf16, #tpu.memory_space<vmem>>, vector<1x1x128x128xbf16>,
    %c2_69 = arith.constant 2 : index
    %c1_70 = arith.constant 1 : index
    %c0_71 = arith.constant 0 : index
    %c0_72 = arith.constant 0 : index
    %67 = vector.load %arg4[%c2_69, %c1_70, %c0_71, %c0_72] : memref<3x2x256x128xbf16, #tpu.memory_space<vmem>>, vector<1x1x256x128xbf16>
    %68 = vector.shape_cast %67 : vector<1x1x256x128xbf16> to vector<256x128xbf16>
    %cst_73 = arith.constant dense<0.000000e+00> : vector<128x128xf32>
    %69 = tpu.matmul %1, %68, %cst_73 {dimension_numbers = #tpu.dot_dimension_numbers<[1], [0], [0], [1], [0, 0, 1, 1], [], []>} : vector<128x256xbf16>, vector<256x128xbf16>, vector<128x128xf32> -> vector<128x128xf32>
    %c2_74 = arith.constant 2 : index
    %c1_75 = arith.constant 1 : index
    %c0_76 = arith.constant 0 : index
    %c0_77 = arith.constant 0 : index
    %70 = vector.load %arg5[%c2_74, %c1_75, %c0_76, %c0_77] : memref<3x2x1x128xf32, #tpu.memory_space<vmem>>, vector<1x1x1x128xf32>
    %71 = vector.shape_cast %70 : vector<1x1x1x128xf32> to vector<1x128xf32>
    %72 = vector.broadcast %71 : vector<1x128xf32> to vector<128x128xf32>
    %73 = arith.addf %69, %72 : vector<128x128xf32>
    %cst_78 = arith.constant 0.000000e+00 : f32
    %74 = vector.broadcast %cst_78 : f32 to vector<128x128xf32>
    %75 = arith.maximumf %73, %74 : vector<128x128xf32>
    %76 = arith.truncf %75 : vector<128x128xf32> to vector<128x128xbf16>
    %c0_79 = arith.constant 0 : index
    %c1_80 = arith.constant 1 : index
    %c0_81 = arith.constant 0 : index
    %c0_82 = arith.constant 0 : index
    %77 = vector.load %arg8[%c0_79, %c1_80, %c0_81, %c0_82] : memref<1x2x128x128xbf16, #tpu.memory_space<vmem>>, vector<1x1x128x128xbf16>
    %78 = vector.shape_cast %77 : vector<1x1x128x128xbf16> to vector<128x128xbf16>
    %79 = vector.shape_cast %76 : vector<128x128xbf16> to vector<1x1x128x128xbf16>
    tpu.vector_store %arg8[%c0_79, %c1_80, %c0_81, %c0_82], %79 {strides = array<i32>} : memref<1x2x128x128xbf16, #tpu.memory_space<vmem>>, vector<1x1x128x128xbf16>,
    return
  }
  func.func @transform_0(%arg0: i32, %arg1: i32, %arg2: i32) -> (i32, i32, i32) {
    %c0_i32 = arith.constant 0 : i32
    %c0_i32_0 = arith.constant 0 : i32
    return %arg0, %arg1, %c0_i32 : i32, i32, i32
  }
  func.func @transform_1(%arg0: i32, %arg1: i32, %arg2: i32) -> (i32, i32, i32, i32) {
    %c0_i32 = arith.constant 0 : i32
    %c0_i32_0 = arith.constant 0 : i32
    %c0_i32_1 = arith.constant 0 : i32
    %c0_i32_2 = arith.constant 0 : i32
    return %c0_i32, %arg2, %c0_i32_0, %c0_i32_1 : i32, i32, i32, i32
  }
  func.func @transform_2(%arg0: i32, %arg1: i32, %arg2: i32) -> (i32, i32, i32, i32) {
    %c0_i32 = arith.constant 0 : i32
    %c0_i32_0 = arith.constant 0 : i32
    %c0_i32_1 = arith.constant 0 : i32
    %c0_i32_2 = arith.constant 0 : i32
    return %c0_i32, %arg2, %c0_i32_0, %c0_i32_1 : i32, i32, i32, i32
  }
  func.func @transform_3(%arg0: i32, %arg1: i32, %arg2: i32) -> (i32, i32, i32, i32) {
    %c0_i32 = arith.constant 0 : i32
    %c0_i32_0 = arith.constant 0 : i32
    return %arg0, %arg2, %arg1, %c0_i32 : i32, i32, i32, i32
  }
  func.func @transform_4(%arg0: i32, %arg1: i32, %arg2: i32) -> (i32, i32, i32, i32) {
    %c0_i32 = arith.constant 0 : i32
    %c0_i32_0 = arith.constant 0 : i32
    return %arg0, %arg2, %arg1, %c0_i32 : i32, i32, i32, i32
  }
  func.func @transform_5(%arg0: i32, %arg1: i32, %arg2: i32) -> (i32, i32, i32, i32) {
    %c0_i32 = arith.constant 0 : i32
    %c0_i32_0 = arith.constant 0 : i32
    return %arg0, %arg2, %arg1, %c0_i32 : i32, i32, i32, i32
  }
}

</mosaic_0001>

<llo_original>
// kernel: tpu_custom_call.1
$region0: #{tpu_custom_call.1}
  #allocation0 [shape = 'u32[]', space=smem, size = 0x4, offset = 0x4, fixed_abs, tag = 'smem constant byte address 0x4 - core index']
  #allocation1 [shape = 'u32[144,128]{1,0:T(1,128)}', space=vmem, size = 0x12000, scoped, tag = 'internal scratch']
  #allocation12 [shape = 's32[]', space=sflag, size = 0x4, offset = 0, fixed_abs, tag = 'sflag constant byte address 0x0 - dummy sync flag']
  #allocation14 [shape = 's32[]', space=sflag, size = 0x4, offset = 0, fixed_abs, tag = 'sflag constant byte address 0x0 - dummy sync flag']
  #allocation16 [shape = 's32[]', space=sflag, size = 0x4, offset = 0, fixed_abs, tag = 'sflag constant byte address 0x0 - dummy sync flag']
  %s0 = inlined_call_operand.hbm [shape: bf16[2,256,256], index: 0, kind: input, shape index: {}]
  %s1 = inlined_call_operand.hbm [shape: bf16[3,2,256,128], index: 1, kind: input, shape index: {}]
  %s2 = inlined_call_operand.hbm [shape: f32[3,2,1,128], index: 2, kind: input, shape index: {}]
  %s3 = inlined_call_operand.hbm [shape: bf16[2,2,256,128], index: 3, kind: output, shape index: {0}]
  %s4 = inlined_call_operand.hbm [shape: bf16[2,2,256,128], index: 4, kind: output, shape index: {1}]
  %s5 = inlined_call_operand.hbm [shape: bf16[2,2,256,128], index: 5, kind: output, shape index: {2}]
  %6 = xla_tuple %s3, %s4, %s5
  %s7 = sld [smem:[#allocation0]]
  $region73: #{tpu_custom_call.1} parent=0
    _
  %s9 = ssub.s32 1, %s7
  %s10 = scalar_select 0, %s9, %s7
  $region1: #{tpu_custom_call.1} parent=0
    #allocation2 [shape = 'u8[131072]{0}', space=vmem, size = 0x20000, scoped, tag = 'input window, operand 0']
    #allocation3 [shape = 's32[2]{0}', space=sflag, size = 0x8, scoped, tag = 'scoped memory for tpu_custom_call.1']
    #allocation4 [shape = 's32[2]{0}', space=sflag, size = 0x8, scoped, tag = 'scoped memory for tpu_custom_call.1']
    #allocation5 [shape = 'u8[393216]{0}', space=vmem, size = 0x60000, scoped, tag = 'input window, operand 1, single buffered']
    #allocation6 [shape = 's32[1]{0}', space=sflag, size = 0x4, scoped, tag = 'scoped memory for tpu_custom_call.1']
    #allocation7 [shape = 'u8[3072]{0}', space=vmem, size = 0xc00, scoped, tag = 'input window, operand 2, single buffered']
    #allocation8 [shape = 'u8[131072]{0}', space=vmem, size = 0x20000, scoped, tag = 'output window, operand 0']
    #allocation9 [shape = 'u8[131072]{0}', space=vmem, size = 0x20000, scoped, tag = 'output window, operand 1']
    #allocation10 [shape = 's32[2]{0}', space=sflag, size = 0x8, scoped, tag = 'scoped memory for tpu_custom_call.1']
    #allocation11 [shape = 'u8[131072]{0}', space=vmem, size = 0x20000, scoped, tag = 'output window, operand 2']
    %11 = vsyncpa [#allocation3], 0
    %s12 = scalar_lea.sflag [#allocation3], 1
    %13 = vsyncpa %s12, 0
    %14 = vsyncpa [#allocation6], 0
    %15 = vsyncpa [#allocation4], 0
    %s16 = scalar_lea.sflag [#allocation4], 1
    %17 = vsyncpa %s16, 0
    %18 = vsyncpa [#allocation10], 0
    %s19 = scalar_lea.sflag [#allocation10], 1
    %20 = vsyncpa %s19, 0
    loop: start=0, step=1, limit=6
    $region2: #{tpu_custom_call.1} parent=1 // loop_pre_header
      _
    $region3: #{tpu_custom_call.1} parent=1 // loop_header
      %s22 = sphi 0, %s26
      %p23 = scmp.ge.s32.totalorder %s22, 6
      %s29 = sphi 0, %s48
      %s30 = sphi 0, %s44
      %s31 = sphi 0, %s40
      %s32 = sphi 0, %s29
      %s33 = sphi 0, %s30
      %s34 = sphi 0, %s31
      %s35 = sphi 0, %s32
      %s36 = sphi 0, %s33
      %s37 = sphi 0, %s34
      %s53 = sphi 0, %s55
      %s56 = sphi 0, %s53
      %s57 = sphi 0, %s56
      %s73 = sphi 0, %s57
      %s79 = sphi 0, %s81
      %s82 = sphi 0, %s79
      %s83 = sphi 0, %s82
      %s99 = sphi 0, %s83
      %s105 = sphi 0, %s107
      %s108 = sphi 0, %s105
      %s109 = sphi 0, %s108
      %s125 = sphi 0, %s109
      %s135 = sphi 0, %s137
      %s138 = sphi 0, %s135
      %s139 = sphi 0, %s138
      %s155 = sphi 0, %s139
      %s165 = sphi 0, %s167
      %s168 = sphi 0, %s165
      %s169 = sphi 0, %s168
      %s185 = sphi 0, %s169
      %s195 = sphi 0, %s197
      %s198 = sphi 0, %s195
      %s199 = sphi 0, %s198
      %s215 = sphi 0, %s199
    $region4: #{tpu_custom_call.1} parent=1 // loop_header_branch
      %25 = sbr.rel (%p23) target = $region8
    $region5: #{tpu_custom_call.1} parent=1 // loop_body
      %s27 = ssub.s32 %s22, 1
      %s28 = ssub.s32 %s22, 2
      %s38 = sadd.s32 1, %s31
      %p39 = scmp.ge.s32.totalorder %s38, 1
      %s40 = scalar_select %p39, 0, %s38
      %s41 = sadd.s32 1, %s30
      %s42 = scalar_select %p39, %s41, %s30
      %p43 = scmp.ge.s32.totalorder %s42, 2
      %s44 = scalar_select %p43, 0, %s42
      %s45 = sadd.s32 1, %s29
      %s46 = scalar_select %p43, %s45, %s29
      %p47 = scmp.ge.s32.totalorder %s46, 2
      %s48 = scalar_select %p47, 0, %s46
      %s49 = ssub.s32 %s29, %s48
      %s50 = ssub.s32 %s30, %s44
      %s51 = sor.u32 %s49, %s50
      %p52 = scmp.eq.s32.totalorder %s51, 0
      %s54 = sadd.s32 %s53, 1
      %s55 = scalar_select %p52, %s53, %s54
      %p58 = pneg %p52
      %p59 = scmp.eq.s32.totalorder %s22, 3
      %p60 = por %p58, %p59
      %p61 = scmp.ne.s32.totalorder %s53, %s56
      %p62 = scmp.eq.s32.totalorder %s22, 0
      %p63 = por %p61, %p62
      %p64 = scmp.ne.s32.totalorder %s53, %s56
      %p65 = scmp.eq.s32.totalorder %s27, 3
      %p66 = por %p64, %p65
      %p67 = scmp.ne.s32.totalorder %s56, %s57
      %p68 = scmp.eq.s32.totalorder %s27, 0
      %p69 = por %p67, %p68
      %p70 = scmp.ne.s32.totalorder %s56, %s57
      %p71 = scmp.eq.s32.totalorder %s28, 3
      %p72 = por %p70, %p71
      %p74 = scmp.ne.s32.totalorder %s57, %s73
      %p75 = scmp.eq.s32.totalorder %s28, 0
      %p76 = por %p74, %p75
      %s77 = ssub.s32 %s31, %s40
      %p78 = scmp.eq.s32.totalorder %s77, 0
      %s80 = sadd.s32 %s79, 1
      %s81 = scalar_select %p78, %s79, %s80
      %p84 = pneg %p78
      %p85 = scmp.eq.s32.totalorder %s22, 3
      %p86 = por %p84, %p85
      %p87 = scmp.ne.s32.totalorder %s79, %s82
      %p88 = scmp.eq.s32.totalorder %s22, 0
      %p89 = por %p87, %p88
      %p90 = scmp.ne.s32.totalorder %s79, %s82
      %p91 = scmp.eq.s32.totalorder %s27, 3
      %p92 = por %p90, %p91
      %p93 = scmp.ne.s32.totalorder %s82, %s83
      %p94 = scmp.eq.s32.totalorder %s27, 0
      %p95 = por %p93, %p94
      %p96 = scmp.ne.s32.totalorder %s82, %s83
      %p97 = scmp.eq.s32.totalorder %s28, 3
      %p98 = por %p96, %p97
      %p100 = scmp.ne.s32.totalorder %s83, %s99
      %p101 = scmp.eq.s32.totalorder %s28, 0
      %p102 = por %p100, %p101
      %s103 = ssub.s32 %s31, %s40
      %p104 = scmp.eq.s32.totalorder %s103, 0
      %s106 = sadd.s32 %s105, 1
      %s107 = scalar_select %p104, %s105, %s106
      %p110 = pneg %p104
      %p111 = scmp.eq.s32.totalorder %s22, 3
      %p112 = por %p110, %p111
      %p113 = scmp.ne.s32.totalorder %s105, %s108
      %p114 = scmp.eq.s32.totalorder %s22, 0
      %p115 = por %p113, %p114
      %p116 = scmp.ne.s32.totalorder %s105, %s108
      %p117 = scmp.eq.s32.totalorder %s27, 3
      %p118 = por %p116, %p117
      %p119 = scmp.ne.s32.totalorder %s108, %s109
      %p120 = scmp.eq.s32.totalorder %s27, 0
      %p121 = por %p119, %p120
      %p122 = scmp.ne.s32.totalorder %s108, %s109
      %p123 = scmp.eq.s32.totalorder %s28, 3
      %p124 = por %p122, %p123
      %p126 = scmp.ne.s32.totalorder %s109, %s125
      %p127 = scmp.eq.s32.totalorder %s28, 0
      %p128 = por %p126, %p127
      %s129 = ssub.s32 %s29, %s48
      %s130 = ssub.s32 %s31, %s40
      %s131 = sor.u32 %s129, %s130
      %s132 = ssub.s32 %s30, %s44
      %s133 = sor.u32 %s131, %s132
      %p134 = scmp.eq.s32.totalorder %s133, 0
      %s136 = sadd.s32 %s135, 1
      %s137 = scalar_select %p134, %s135, %s136
      %p140 = pneg %p134
      %p141 = scmp.eq.s32.totalorder %s22, 3
      %p142 = por %p140, %p141
      %p143 = scmp.ne.s32.totalorder %s135, %s138
      %p144 = scmp.eq.s32.totalorder %s22, 0
      %p145 = por %p143, %p144
      %p146 = scmp.ne.s32.totalorder %s135, %s138
      %p147 = scmp.eq.s32.totalorder %s27, 3
      %p148 = por %p146, %p147
      %p149 = scmp.ne.s32.totalorder %s138, %s139
      %p150 = scmp.eq.s32.totalorder %s27, 0
      %p151 = por %p149, %p150
      %p152 = scmp.ne.s32.totalorder %s138, %s139
      %p153 = scmp.eq.s32.totalorder %s28, 3
      %p154 = por %p152, %p153
      %p156 = scmp.ne.s32.totalorder %s139, %s155
      %p157 = scmp.eq.s32.totalorder %s28, 0
      %p158 = por %p156, %p157
      %s159 = ssub.s32 %s29, %s48
      %s160 = ssub.s32 %s31, %s40
      %s161 = sor.u32 %s159, %s160
      %s162 = ssub.s32 %s30, %s44
      %s163 = sor.u32 %s161, %s162
      %p164 = scmp.eq.s32.totalorder %s163, 0
      %s166 = sadd.s32 %s165, 1
      %s167 = scalar_select %p164, %s165, %s166
      %p170 = pneg %p164
      %p171 = scmp.eq.s32.totalorder %s22, 3
      %p172 = por %p170, %p171
      %p173 = scmp.ne.s32.totalorder %s165, %s168
      %p174 = scmp.eq.s32.totalorder %s22, 0
      %p175 = por %p173, %p174
      %p176 = scmp.ne.s32.totalorder %s165, %s168
      %p177 = scmp.eq.s32.totalorder %s27, 3
      %p178 = por %p176, %p177
      %p179 = scmp.ne.s32.totalorder %s168, %s169
      %p180 = scmp.eq.s32.totalorder %s27, 0
      %p181 = por %p179, %p180
      %p182 = scmp.ne.s32.totalorder %s168, %s169
      %p183 = scmp.eq.s32.totalorder %s28, 3
      %p184 = por %p182, %p183
      %p186 = scmp.ne.s32.totalorder %s169, %s185
      %p187 = scmp.eq.s32.totalorder %s28, 0
      %p188 = por %p186, %p187
      %s189 = ssub.s32 %s29, %s48
      %s190 = ssub.s32 %s31, %s40
      %s191 = sor.u32 %s189, %s190
      %s192 = ssub.s32 %s30, %s44
      %s193 = sor.u32 %s191, %s192
      %p194 = scmp.eq.s32.totalorder %s193, 0
      %s196 = sadd.s32 %s195, 1
      %s197 = scalar_select %p194, %s195, %s196
      %p200 = pneg %p194
      %p201 = scmp.eq.s32.totalorder %s22, 3
      %p202 = por %p200, %p201
      %p203 = scmp.ne.s32.totalorder %s195, %s198
      %p204 = scmp.eq.s32.totalorder %s22, 0
      %p205 = por %p203, %p204
      %p206 = scmp.ne.s32.totalorder %s195, %s198
      %p207 = scmp.eq.s32.totalorder %s27, 3
      %p208 = por %p206, %p207
      %p209 = scmp.ne.s32.totalorder %s198, %s199
      %p210 = scmp.eq.s32.totalorder %s27, 0
      %p211 = por %p209, %p210
      %p212 = scmp.ne.s32.totalorder %s198, %s199
      %p213 = scmp.eq.s32.totalorder %s28, 3
      %p214 = por %p212, %p213
      %p216 = scmp.ne.s32.totalorder %s199, %s215
      %p217 = scmp.eq.s32.totalorder %s28, 0
      %p218 = por %p216, %p217
      %p219 = scmp.le.s32.totalorder 1, %s22
      %p220 = scmp.lt.s32.totalorder %s22, 5
      %p221 = pnand %p219, %p220
      %p222 = pneg %p221
      // Predicated region
      $region9: #{tpu_custom_call.1} parent=5 // pred_check
        _
      $region10: #{tpu_custom_call.1} parent=5 // pred_check_branch
        %224 = sbr.rel (%p221) target = $region12
      $region11: #{tpu_custom_call.1} parent=5 // pred_region
        %s225 = ssub.s32 %s22, 1
        // Predicated region
        $region13: #{tpu_custom_call.1} parent=11 // pred_check
          %p226 = pneg %p95
        $region14: #{tpu_custom_call.1} parent=11 // pred_check_branch
          %228 = sbr.rel (%p226) target = $region16
        $region15: #{tpu_custom_call.1} parent=11 // pred_region
          %s229 = smul.u32 2, %s34
          %s231 = ssub.s32 12288, 12288
          %232 = vsyncadd [#allocation6], %s231
          %s233 = smul.addr %s229, 32
          %s234 = smul.addr %s233, 64
          %s235 = scalar_lea.hbm %s1, %s234
          %s236 = sshll.u32 [#allocation5], 4
          %s237 = int_to_ptr.vmem [resolvable:$true] %s236
          %242 = dma.hbm_to_vmem [thread:$0]  %s235, 12288, %s237, [#allocation6], 64, 64, 4
        $region16: #{tpu_custom_call.1} parent=11 // pred_fallthru
          _
        // Predicated region
        $region17: #{tpu_custom_call.1} parent=11 // pred_check
          %p243 = pneg %p121
        $region18: #{tpu_custom_call.1} parent=11 // pred_check_branch
          %245 = sbr.rel (%p243) target = $region20
        $region19: #{tpu_custom_call.1} parent=11 // pred_region
          %s246 = smul.u32 2, %s34
          %s248 = ssub.s32 96, 96
          %249 = vsyncadd [#allocation6], %s248
          %s250 = smul.addr %s246, 16
          %s251 = scalar_lea.hbm %s2, %s250
          %s252 = sshll.u32 [#allocation7], 4
          %s253 = int_to_ptr.vmem [resolvable:$true] %s252
          %258 = dma.hbm_to_vmem [thread:$0]  %s251, 96, %s253, [#allocation6], 16, 16, 1
        $region20: #{tpu_custom_call.1} parent=11 // pred_fallthru
          _
      $region12: #{tpu_custom_call.1} parent=5 // pred_fallthru
        _
      %p259 = scmp.lt.s32.totalorder %s22, 4
      // Predicated region
      $region21: #{tpu_custom_call.1} parent=5 // pred_check
        %p260 = pneg %p259
      $region22: #{tpu_custom_call.1} parent=5 // pred_check_branch
        %262 = sbr.rel (%p260) target = $region24
      $region23: #{tpu_custom_call.1} parent=5 // pred_region
        // Predicated region
        $region25: #{tpu_custom_call.1} parent=23 // pred_check
          %p263 = pneg %p63
        $region26: #{tpu_custom_call.1} parent=23 // pred_check_branch
          %265 = sbr.rel (%p263) target = $region28
        $region27: #{tpu_custom_call.1} parent=23 // pred_region
          %s266 = sand.u32 %s53, 1
          %s267 = scalar_lea.sflag [#allocation3], %s266
          %s268 = sand.u32 %s53, 1
          %s269 = smul.addr %s268, 128
          %s270 = scalar_lea.vmem [#allocation2], %s269
          %s271 = smul.u32 16, %s30
          %s273 = ssub.s32 2048, 2048
          %274 = vsyncadd %s267, %s273
          %s275 = smul.addr %s271, 2
          %s276 = smul.addr %s29, 64
          %s277 = sadd.s32 %s275, %s276
          %s278 = smul.addr %s277, 64
          %s279 = scalar_lea.hbm %s0, %s278
          %s280 = sshll.u32 %s270, 4
          %s281 = int_to_ptr.vmem [resolvable:$true] %s280
          %286 = dma.hbm_to_vmem [thread:$0]  %s279, 2048, %s281, %s267, 128, 128, 8
        $region28: #{tpu_custom_call.1} parent=23 // pred_fallthru
          _
      $region24: #{tpu_custom_call.1} parent=5 // pred_fallthru
        _
      %p287 = scmp.le.s32.totalorder 1, %s22
      %p288 = scmp.lt.s32.totalorder %s22, 5
      %p289 = pnand %p287, %p288
      %p290 = pneg %p289
      // Predicated region
      $region29: #{tpu_custom_call.1} parent=5 // pred_check
        _
      $region30: #{tpu_custom_call.1} parent=5 // pred_check_branch
        %292 = sbr.rel (%p289) target = $region32
      $region31: #{tpu_custom_call.1} parent=5 // pred_region
        %s293 = ssub.s32 %s22, 1
        %s294 = sand.u32 %s56, 1
        %s295 = scalar_lea.sflag [#allocation3], %s294
        %s296 = sand.u32 %s56, 1
        %s297 = smul.addr %s296, 128
        %s298 = scalar_lea.vmem [#allocation2], %s297
        // Predicated region
        $region33: #{tpu_custom_call.1} parent=31 // pred_check
          %p299 = pneg %p69
        $region34: #{tpu_custom_call.1} parent=31 // pred_check_branch
          %301 = sbr.rel (%p299) target = $region36
        $region35: #{tpu_custom_call.1} parent=31 // pred_region
          %302 = dma.done %s295, 2048
        $region36: #{tpu_custom_call.1} parent=31 // pred_fallthru
          _
        // Predicated region
        $region37: #{tpu_custom_call.1} parent=31 // pred_check
          %p303 = pneg %p95
        $region38: #{tpu_custom_call.1} parent=31 // pred_check_branch
          %305 = sbr.rel (%p303) target = $region40
        $region39: #{tpu_custom_call.1} parent=31 // pred_region
          %306 = dma.done [#allocation6], 12288
        $region40: #{tpu_custom_call.1} parent=31 // pred_fallthru
          _
        // Predicated region
        $region41: #{tpu_custom_call.1} parent=31 // pred_check
          %p307 = pneg %p121
        $region42: #{tpu_custom_call.1} parent=31 // pred_check_branch
          %309 = sbr.rel (%p307) target = $region44
        $region43: #{tpu_custom_call.1} parent=31 // pred_region
          %310 = dma.done [#allocation6], 96
        $region44: #{tpu_custom_call.1} parent=31 // pred_fallthru
          _
        %s311 = sand.u32 %s56, 1
        %s312 = scalar_lea.sflag [#allocation3], %s311
        %s313 = sand.u32 %s56, 1
        %s314 = smul.addr %s313, 128
        %s315 = scalar_lea.vmem [#allocation2], %s314
        %p316 = pneg %p69
        %p317 = pneg %p66
        %p318 = pneg %p95
        %p319 = pneg %p92
        %p320 = pneg %p121
        %p321 = pneg %p118
        %p322 = pneg %p151
        %p323 = pneg %p148
        %s324 = sand.u32 %s138, 1
        %s325 = scalar_lea.sflag [#allocation4], %s324
        %s326 = sand.u32 %s138, 1
        %s327 = smul.addr %s326, 128
        %s328 = scalar_lea.vmem [#allocation8], %s327
        %p329 = pneg %p181
        %p330 = pneg %p178
        %s331 = sand.u32 %s27, 1
        %s332 = scalar_lea.sflag [#allocation10], %s331
        %s333 = sand.u32 %s168, 1
        %s334 = smul.addr %s333, 128
        %s335 = scalar_lea.vmem [#allocation9], %s334
        %p336 = pneg %p211
        %p337 = pneg %p208
        %s338 = sand.u32 %s27, 1
        %s339 = scalar_lea.sflag [#allocation10], %s338
        %s340 = sand.u32 %s198, 1
        %s341 = smul.addr %s340, 128
        %s342 = scalar_lea.vmem [#allocation11], %s341
        %s343 = smul.u32 16, %s33
        %s344 = smul.u32 2, %s34
        %s345 = smul.u32 2, %s34
        %s346 = smul.u32 2, %s34
        %s347 = smul.u32 16, %s33
        %s348 = smul.u32 2, %s34
        %s349 = smul.u32 16, %s33
        %s350 = smul.u32 2, %s34
        %s351 = smul.u32 16, %s33
        %v353 = vld [vmem:[%s298] sm:$0xff]
        %v354 = vld [vmem:[%s298 + $0x8] sm:$0xff]
        %v355 = vld [vmem:[%s298 + $0x10] sm:$0xff]
        %v356 = vld [vmem:[%s298 + $0x18] sm:$0xff]
        %v357 = vld [vmem:[%s298 + $0x20] sm:$0xff]
        %v358 = vld [vmem:[%s298 + $0x28] sm:$0xff]
        %v359 = vld [vmem:[%s298 + $0x30] sm:$0xff]
        %v360 = vld [vmem:[%s298 + $0x38] sm:$0xff]
        %v361 = vld [vmem:[%s298 + $0x40] sm:$0xff]
        %v362 = vld [vmem:[%s298 + $0x48] sm:$0xff]
        %v363 = vld [vmem:[%s298 + $0x50] sm:$0xff]
        %v364 = vld [vmem:[%s298 + $0x58] sm:$0xff]
        %v365 = vld [vmem:[%s298 + $0x60] sm:$0xff]
        %v366 = vld [vmem:[%s298 + $0x68] sm:$0xff]
        %v367 = vld [vmem:[%s298 + $0x70] sm:$0xff]
        %v368 = vld [vmem:[%s298 + $0x78] sm:$0xff]
        %v369 = vld [vmem:[#allocation5] sm:$0xf]
        %v370 = vld [vmem:[#allocation5 + $0x4] sm:$0xf]
        %v371 = vld [vmem:[#allocation5 + $0x8] sm:$0xf]
        %v372 = vld [vmem:[#allocation5 + $0xc] sm:$0xf]
        %v373 = vld [vmem:[#allocation5 + $0x10] sm:$0xf]
        %v374 = vld [vmem:[#allocation5 + $0x14] sm:$0xf]
        %v375 = vld [vmem:[#allocation5 + $0x18] sm:$0xf]
        %v376 = vld [vmem:[#allocation5 + $0x1c] sm:$0xf]
        %v377 = vld [vmem:[#allocation5 + $0x20] sm:$0xf]
        %v378 = vld [vmem:[#allocation5 + $0x24] sm:$0xf]
        %v379 = vld [vmem:[#allocation5 + $0x28] sm:$0xf]
        %v380 = vld [vmem:[#allocation5 + $0x2c] sm:$0xf]
        %v381 = vld [vmem:[#allocation5 + $0x30] sm:$0xf]
        %v382 = vld [vmem:[#allocation5 + $0x34] sm:$0xf]
        %v383 = vld [vmem:[#allocation5 + $0x38] sm:$0xf]
        %v384 = vld [vmem:[#allocation5 + $0x3c] sm:$0xf]
        %v385 = vld [vmem:[#allocation5 + $0x40] sm:$0xf]
        %v386 = vld [vmem:[#allocation5 + $0x44] sm:$0xf]
        %v387 = vld [vmem:[#allocation5 + $0x48] sm:$0xf]
        %v388 = vld [vmem:[#allocation5 + $0x4c] sm:$0xf]
        %v389 = vld [vmem:[#allocation5 + $0x50] sm:$0xf]
        %v390 = vld [vmem:[#allocation5 + $0x54] sm:$0xf]
        %v391 = vld [vmem:[#allocation5 + $0x58] sm:$0xf]
        %v392 = vld [vmem:[#allocation5 + $0x5c] sm:$0xf]
        %v393 = vld [vmem:[#allocation5 + $0x60] sm:$0xf]
        %v394 = vld [vmem:[#allocation5 + $0x64] sm:$0xf]
        %v395 = vld [vmem:[#allocation5 + $0x68] sm:$0xf]
        %v396 = vld [vmem:[#allocation5 + $0x6c] sm:$0xf]
        %v397 = vld [vmem:[#allocation5 + $0x70] sm:$0xf]
        %v398 = vld [vmem:[#allocation5 + $0x74] sm:$0xf]
        %v399 = vld [vmem:[#allocation5 + $0x78] sm:$0xf]
        %v400 = vld [vmem:[#allocation5 + $0x7c] sm:$0xf]
        %v401 = vld [vmem:[#allocation7] sm:$0x1]
        %v403 = vlaneseq
        %v404 = vshrl.u32 %v403, 7
        %v405 = vsub.s32 0, %v404
        %v406 = vrot.slane %v401, %v405
        %v424 = vunpack.c.l.b16 %v353
        %v425 = vunpack.c.h.b16 %v353
        %v426 = vunpack.c.l.b16 %v354
        %v427 = vunpack.c.h.b16 %v354
        %v428 = vunpack.c.l.b16 %v355
        %v429 = vunpack.c.h.b16 %v355
        %v430 = vunpack.c.l.b16 %v356
        %v431 = vunpack.c.h.b16 %v356
        %v432 = vunpack.c.l.b16 %v357
        %v433 = vunpack.c.h.b16 %v357
        %v434 = vunpack.c.l.b16 %v358
        %v435 = vunpack.c.h.b16 %v358
        %v436 = vunpack.c.l.b16 %v359
        %v437 = vunpack.c.h.b16 %v359
        %v438 = vunpack.c.l.b16 %v360
        %v439 = vunpack.c.h.b16 %v360
        %v440 = vunpack.c.l.b16 %v361
        %v441 = vunpack.c.h.b16 %v361
        %v442 = vunpack.c.l.b16 %v362
        %v443 = vunpack.c.h.b16 %v362
        %v444 = vunpack.c.l.b16 %v363
        %v445 = vunpack.c.h.b16 %v363
        %v446 = vunpack.c.l.b16 %v364
        %v447 = vunpack.c.h.b16 %v364
        %v448 = vunpack.c.l.b16 %v365
        %v449 = vunpack.c.h.b16 %v365
        %v450 = vunpack.c.l.b16 %v366
        %v451 = vunpack.c.h.b16 %v366
        %v452 = vunpack.c.l.b16 %v367
        %v453 = vunpack.c.h.b16 %v367
        %v454 = vunpack.c.l.b16 %v368
        %v455 = vunpack.c.h.b16 %v368
        %v456 = vpack.c.b16 %v426, %v424
        %v457 = vpack.c.b16 %v427, %v425
        %v458 = vpack.c.b16 %v430, %v428
        %v459 = vpack.c.b16 %v431, %v429
        %v460 = vpack.c.b16 %v434, %v432
        %v461 = vpack.c.b16 %v435, %v433
        %v462 = vpack.c.b16 %v438, %v436
        %v463 = vpack.c.b16 %v439, %v437
        %v464 = vpack.c.b16 %v442, %v440
        %v465 = vpack.c.b16 %v443, %v441
        %v466 = vpack.c.b16 %v446, %v444
        %v467 = vpack.c.b16 %v447, %v445
        %v468 = vpack.c.b16 %v450, %v448
        %v469 = vpack.c.b16 %v451, %v449
        %v470 = vpack.c.b16 %v454, %v452
        %v471 = vpack.c.b16 %v455, %v453
        %v520 = vunpack.c.l.b16 %v369
        %v521 = vunpack.c.l.b16 %v370
        %v522 = vunpack.c.l.b16 %v371
        %v523 = vunpack.c.l.b16 %v372
        %v524 = vunpack.c.l.b16 %v373
        %v525 = vunpack.c.l.b16 %v374
        %v526 = vunpack.c.l.b16 %v375
        %v527 = vunpack.c.l.b16 %v376
        %v528 = vunpack.c.l.b16 %v377
        %v529 = vunpack.c.l.b16 %v378
        %v530 = vunpack.c.l.b16 %v379
        %v531 = vunpack.c.l.b16 %v380
        %v532 = vunpack.c.l.b16 %v381
        %v533 = vunpack.c.l.b16 %v382
        %v534 = vunpack.c.l.b16 %v383
        %v535 = vunpack.c.l.b16 %v384
        %v536 = vunpack.c.l.b16 %v385
        %v537 = vunpack.c.l.b16 %v386
        %v538 = vunpack.c.l.b16 %v387
        %v539 = vunpack.c.l.b16 %v388
        %v540 = vunpack.c.l.b16 %v389
        %v541 = vunpack.c.l.b16 %v390
        %v542 = vunpack.c.l.b16 %v391
        %v543 = vunpack.c.l.b16 %v392
        %v544 = vunpack.c.l.b16 %v393
        %v545 = vunpack.c.l.b16 %v394
        %v546 = vunpack.c.l.b16 %v395
        %v547 = vunpack.c.l.b16 %v396
        %v548 = vunpack.c.l.b16 %v397
        %v549 = vunpack.c.l.b16 %v398
        %v550 = vunpack.c.l.b16 %v399
        %v551 = vunpack.c.l.b16 %v400
        %v552 = vpack.c.b16 %v521, %v520
        %v553 = vpack.c.b16 %v523, %v522
        %v554 = vpack.c.b16 %v525, %v524
        %v555 = vpack.c.b16 %v527, %v526
        %v556 = vpack.c.b16 %v529, %v528
        %v557 = vpack.c.b16 %v531, %v530
        %v558 = vpack.c.b16 %v533, %v532
        %v559 = vpack.c.b16 %v535, %v534
        %v560 = vpack.c.b16 %v537, %v536
        %v561 = vpack.c.b16 %v539, %v538
        %v562 = vpack.c.b16 %v541, %v540
        %v563 = vpack.c.b16 %v543, %v542
        %v564 = vpack.c.b16 %v545, %v544
        %v565 = vpack.c.b16 %v547, %v546
        %v566 = vpack.c.b16 %v549, %v548
        %v567 = vpack.c.b16 %v551, %v550
        %584 = vmatprep.subr.bf16.mxu0 0
        %585 = vmatpush1.bf16.msra.mxu0 %v559
        %586 = vmatprep.subr.bf16.mxu0 0
        %587 = vmatpush1.bf16.msra.mxu0 %v558
        %588 = vmatprep.subr.bf16.mxu0 0
        %589 = vmatpush1.bf16.msra.mxu0 %v557
        %590 = vmatprep.subr.bf16.mxu0 0
        %591 = vmatpush1.bf16.msra.mxu0 %v556
        %592 = vmatprep.subr.bf16.mxu0 0
        %593 = vmatpush1.bf16.msra.mxu0 %v555
        %594 = vmatprep.subr.bf16.mxu0 0
        %595 = vmatpush1.bf16.msra.mxu0 %v554
        %596 = vmatprep.subr.bf16.mxu0 0
        %597 = vmatpush1.bf16.msra.mxu0 %v553
        %598 = vmatprep.subr.bf16.mxu0 0
        %599 = vmatpush1.bf16.msra.mxu0 %v552
        %600 = vmatprep.subr.bf16.mxu0 0
        %601 = vmatpush2.bf16.msra.mxu0 %v567
        %602 = vmatprep.subr.bf16.mxu0 0
        %603 = vmatpush2.bf16.msra.mxu0 %v566
        %604 = vmatprep.subr.bf16.mxu0 0
        %605 = vmatpush2.bf16.msra.mxu0 %v565
        %606 = vmatprep.subr.bf16.mxu0 0
        %607 = vmatpush2.bf16.msra.mxu0 %v564
        %608 = vmatprep.subr.bf16.mxu0 0
        %609 = vmatpush2.bf16.msra.mxu0 %v563
        %610 = vmatprep.subr.bf16.mxu0 0
        %611 = vmatpush2.bf16.msra.mxu0 %v562
        %612 = vmatprep.subr.bf16.mxu0 0
        %613 = vmatpush2.bf16.msra.mxu0 %v561
        %614 = vmatprep.subr.bf16.mxu0 0
        %615 = vmatpush2.bf16.msra.mxu0 %v560
        %616 = vmatprep.mubr.bf16.mxu0 %v457
        %617 = vmatmul.mubr.bf16.gmra.mxu0 %v456
        %v618 = vpop.f32.mrf.mxu0
        %v619 = vadd.f32 %v406, %v618
        %v620 = vpop.f32.mrf.mxu0
        %v621 = vpop.f32.mrf.mxu0
        %v622 = vadd.f32 %v406, %v621
        %v623 = vpop.f32.mrf.mxu0
        %624 = vmatprep.mubr.bf16.mxu0 %v459
        %625 = vmatmul.mubr.bf16.gmra.mxu0 %v458
        %v626 = vpop.f32.mrf.mxu0
        %v627 = vadd.f32 %v406, %v626
        %v628 = vpop.f32.mrf.mxu0
        %v629 = vpop.f32.mrf.mxu0
        %v630 = vadd.f32 %v406, %v629
        %v631 = vpop.f32.mrf.mxu0
        %632 = vmatprep.mubr.bf16.mxu0 %v461
        %633 = vmatmul.mubr.bf16.gmra.mxu0 %v460
        %v634 = vpop.f32.mrf.mxu0
        %v635 = vadd.f32 %v406, %v634
        %v636 = vpop.f32.mrf.mxu0
        %v637 = vpop.f32.mrf.mxu0
        %v638 = vadd.f32 %v406, %v637
        %v639 = vpop.f32.mrf.mxu0
        %640 = vmatprep.mubr.bf16.mxu0 %v463
        %641 = vmatmul.mubr.bf16.gmra.mxu0 %v462
        %v642 = vpop.f32.mrf.mxu0
        %v643 = vadd.f32 %v406, %v642
        %v644 = vpop.f32.mrf.mxu0
        %v645 = vpop.f32.mrf.mxu0
        %v646 = vadd.f32 %v406, %v645
        %v647 = vpop.f32.mrf.mxu0
        %648 = vmatprep.mubr.bf16.mxu0 %v465
        %649 = vmatmul.mubr.bf16.gmra.mxu0 %v464
        %v650 = vpop.f32.mrf.mxu0
        %v651 = vadd.f32 %v406, %v650
        %v652 = vpop.f32.mrf.mxu0
        %v653 = vpop.f32.mrf.mxu0
        %v654 = vadd.f32 %v406, %v653
        %v655 = vpop.f32.mrf.mxu0
        %656 = vmatprep.mubr.bf16.mxu0 %v467
        %657 = vmatmul.mubr.bf16.gmra.mxu0 %v466
        %v658 = vpop.f32.mrf.mxu0
        %v659 = vadd.f32 %v406, %v658
        %v660 = vpop.f32.mrf.mxu0
        %v661 = vpop.f32.mrf.mxu0
        %v662 = vadd.f32 %v406, %v661
        %v663 = vpop.f32.mrf.mxu0
        %664 = vmatprep.mubr.bf16.mxu0 %v469
        %665 = vmatmul.mubr.bf16.gmra.mxu0 %v468
        %v666 = vpop.f32.mrf.mxu0
        %v667 = vadd.f32 %v406, %v666
        %v668 = vpop.f32.mrf.mxu0
        %v669 = vpop.f32.mrf.mxu0
        %v670 = vadd.f32 %v406, %v669
        %v671 = vpop.f32.mrf.mxu0
        %672 = vmatprep.mubr.bf16.mxu0 %v471
        %673 = vmatmul.mubr.bf16.gmra.mxu0 %v470
        %v674 = vpop.f32.mrf.mxu0
        %v675 = vadd.f32 %v406, %v674
        %v676 = vpop.f32.mrf.mxu0
        %v677 = vpop.f32.mrf.mxu0
        %v678 = vadd.f32 %v406, %v677
        %v679 = vpop.f32.mrf.mxu0
        %680 = vdwg.mxu0
        %v681 = vmax.f32 %v619, 0.0
        %v682 = vmax.f32 %v622, 0.0
        %v683 = vmax.f32 %v627, 0.0
        %v684 = vmax.f32 %v630, 0.0
        %v685 = vmax.f32 %v635, 0.0
        %v686 = vmax.f32 %v638, 0.0
        %v687 = vmax.f32 %v643, 0.0
        %v688 = vmax.f32 %v646, 0.0
        %v689 = vmax.f32 %v651, 0.0
        %v690 = vmax.f32 %v654, 0.0
        %v691 = vmax.f32 %v659, 0.0
        %v692 = vmax.f32 %v662, 0.0
        %v693 = vmax.f32 %v667, 0.0
        %v694 = vmax.f32 %v670, 0.0
        %v695 = vmax.f32 %v675, 0.0
        %v696 = vmax.f32 %v678, 0.0
        %v697 = vpack.c.bf16 %v682, %v681
        %v698 = vpack.c.bf16 %v684, %v683
        %v699 = vpack.c.bf16 %v686, %v685
        %v700 = vpack.c.bf16 %v688, %v687
        %v701 = vpack.c.bf16 %v690, %v689
        %v702 = vpack.c.bf16 %v692, %v691
        %v703 = vpack.c.bf16 %v694, %v693
        %v704 = vpack.c.bf16 %v696, %v695
        %v713 = vunpack.c.l.b16 %v697
        %v714 = vunpack.c.h.b16 %v697
        %v715 = vunpack.c.l.b16 %v698
        %v716 = vunpack.c.h.b16 %v698
        %v717 = vunpack.c.l.b16 %v699
        %v718 = vunpack.c.h.b16 %v699
        %v719 = vunpack.c.l.b16 %v700
        %v720 = vunpack.c.h.b16 %v700
        %v721 = vunpack.c.l.b16 %v701
        %v722 = vunpack.c.h.b16 %v701
        %v723 = vunpack.c.l.b16 %v702
        %v724 = vunpack.c.h.b16 %v702
        %v725 = vunpack.c.l.b16 %v703
        %v726 = vunpack.c.h.b16 %v703
        %v727 = vunpack.c.l.b16 %v704
        %v728 = vunpack.c.h.b16 %v704
        %v729 = vpack.c.b16 %v713, %v713
        %v730 = vpack.c.b16 %v714, %v714
        %v731 = vpack.c.b16 %v715, %v715
        %v732 = vpack.c.b16 %v716, %v716
        %v733 = vpack.c.b16 %v717, %v717
        %v734 = vpack.c.b16 %v718, %v718
        %v735 = vpack.c.b16 %v719, %v719
        %v736 = vpack.c.b16 %v720, %v720
        %v737 = vpack.c.b16 %v721, %v721
        %v738 = vpack.c.b16 %v722, %v722
        %v739 = vpack.c.b16 %v723, %v723
        %v740 = vpack.c.b16 %v724, %v724
        %v741 = vpack.c.b16 %v725, %v725
        %v742 = vpack.c.b16 %v726, %v726
        %v743 = vpack.c.b16 %v727, %v727
        %v744 = vpack.c.b16 %v728, %v728
        %761 = vst [vmem:[%s328] sm:$0xf] %v729
        %762 = vst [vmem:[%s328 + $0x4] sm:$0xf] %v730
        %763 = vst [vmem:[%s328 + $0x8] sm:$0xf] %v731
        %764 = vst [vmem:[%s328 + $0xc] sm:$0xf] %v732
        %765 = vst [vmem:[%s328 + $0x10] sm:$0xf] %v733
        %766 = vst [vmem:[%s328 + $0x14] sm:$0xf] %v734
        %767 = vst [vmem:[%s328 + $0x18] sm:$0xf] %v735
        %768 = vst [vmem:[%s328 + $0x1c] sm:$0xf] %v736
        %769 = vst [vmem:[%s328 + $0x20] sm:$0xf] %v737
        %770 = vst [vmem:[%s328 + $0x24] sm:$0xf] %v738
        %771 = vst [vmem:[%s328 + $0x28] sm:$0xf] %v739
        %772 = vst [vmem:[%s328 + $0x2c] sm:$0xf] %v740
        %773 = vst [vmem:[%s328 + $0x30] sm:$0xf] %v741
        %774 = vst [vmem:[%s328 + $0x34] sm:$0xf] %v742
        %775 = vst [vmem:[%s328 + $0x38] sm:$0xf] %v743
        %776 = vst [vmem:[%s328 + $0x3c] sm:$0xf] %v744
        %s777 = scalar_lea.vmem [#allocation5], 128
        %v778 = vld [vmem:[%s777] sm:$0xf]
        %v779 = vld [vmem:[%s777 + $0x4] sm:$0xf]
        %v780 = vld [vmem:[%s777 + $0x8] sm:$0xf]
        %v781 = vld [vmem:[%s777 + $0xc] sm:$0xf]
        %v782 = vld [vmem:[%s777 + $0x10] sm:$0xf]
        %v783 = vld [vmem:[%s777 + $0x14] sm:$0xf]
        %v784 = vld [vmem:[%s777 + $0x18] sm:$0xf]
        %v785 = vld [vmem:[%s777 + $0x1c] sm:$0xf]
        %v786 = vld [vmem:[%s777 + $0x20] sm:$0xf]
        %v787 = vld [vmem:[%s777 + $0x24] sm:$0xf]
        %v788 = vld [vmem:[%s777 + $0x28] sm:$0xf]
        %v789 = vld [vmem:[%s777 + $0x2c] sm:$0xf]
        %v790 = vld [vmem:[%s777 + $0x30] sm:$0xf]
        %v791 = vld [vmem:[%s777 + $0x34] sm:$0xf]
        %v792 = vld [vmem:[%s777 + $0x38] sm:$0xf]
        %v793 = vld [vmem:[%s777 + $0x3c] sm:$0xf]
        %v794 = vld [vmem:[%s777 + $0x40] sm:$0xf]
        %v795 = vld [vmem:[%s777 + $0x44] sm:$0xf]
        %v796 = vld [vmem:[%s777 + $0x48] sm:$0xf]
        %v797 = vld [vmem:[%s777 + $0x4c] sm:$0xf]
        %v798 = vld [vmem:[%s777 + $0x50] sm:$0xf]
        %v799 = vld [vmem:[%s777 + $0x54] sm:$0xf]
        %v800 = vld [vmem:[%s777 + $0x58] sm:$0xf]
        %v801 = vld [vmem:[%s777 + $0x5c] sm:$0xf]
        %v802 = vld [vmem:[%s777 + $0x60] sm:$0xf]
        %v803 = vld [vmem:[%s777 + $0x64] sm:$0xf]
        %v804 = vld [vmem:[%s777 + $0x68] sm:$0xf]
        %v805 = vld [vmem:[%s777 + $0x6c] sm:$0xf]
        %v806 = vld [vmem:[%s777 + $0x70] sm:$0xf]
        %v807 = vld [vmem:[%s777 + $0x74] sm:$0xf]
        %v808 = vld [vmem:[%s777 + $0x78] sm:$0xf]
        %v809 = vld [vmem:[%s777 + $0x7c] sm:$0xf]
        %s810 = scalar_lea.vmem [#allocation7], 1
        %v811 = vld [vmem:[%s810] sm:$0x1]
        %v813 = vlaneseq
        %v814 = vshrl.u32 %v813, 7
        %v815 = vsub.s32 0, %v814
        %v816 = vrot.slane %v811, %v815
        %v850 = vunpack.c.l.b16 %v778
        %v851 = vunpack.c.l.b16 %v779
        %v852 = vunpack.c.l.b16 %v780
        %v853 = vunpack.c.l.b16 %v781
        %v854 = vunpack.c.l.b16 %v782
        %v855 = vunpack.c.l.b16 %v783
        %v856 = vunpack.c.l.b16 %v784
        %v857 = vunpack.c.l.b16 %v785
        %v858 = vunpack.c.l.b16 %v786
        %v859 = vunpack.c.l.b16 %v787
        %v860 = vunpack.c.l.b16 %v788
        %v861 = vunpack.c.l.b16 %v789
        %v862 = vunpack.c.l.b16 %v790
        %v863 = vunpack.c.l.b16 %v791
        %v864 = vunpack.c.l.b16 %v792
        %v865 = vunpack.c.l.b16 %v793
        %v866 = vunpack.c.l.b16 %v794
        %v867 = vunpack.c.l.b16 %v795
        %v868 = vunpack.c.l.b16 %v796
        %v869 = vunpack.c.l.b16 %v797
        %v870 = vunpack.c.l.b16 %v798
        %v871 = vunpack.c.l.b16 %v799
        %v872 = vunpack.c.l.b16 %v800
        %v873 = vunpack.c.l.b16 %v801
        %v874 = vunpack.c.l.b16 %v802
        %v875 = vunpack.c.l.b16 %v803
        %v876 = vunpack.c.l.b16 %v804
        %v877 = vunpack.c.l.b16 %v805
        %v878 = vunpack.c.l.b16 %v806
        %v879 = vunpack.c.l.b16 %v807
        %v880 = vunpack.c.l.b16 %v808
        %v881 = vunpack.c.l.b16 %v809
        %v882 = vpack.c.b16 %v851, %v850
        %v883 = vpack.c.b16 %v853, %v852
        %v884 = vpack.c.b16 %v855, %v854
        %v885 = vpack.c.b16 %v857, %v856
        %v886 = vpack.c.b16 %v859, %v858
        %v887 = vpack.c.b16 %v861, %v860
        %v888 = vpack.c.b16 %v863, %v862
        %v889 = vpack.c.b16 %v865, %v864
        %v890 = vpack.c.b16 %v867, %v866
        %v891 = vpack.c.b16 %v869, %v868
        %v892 = vpack.c.b16 %v871, %v870
        %v893 = vpack.c.b16 %v873, %v872
        %v894 = vpack.c.b16 %v875, %v874
        %v895 = vpack.c.b16 %v877, %v876
        %v896 = vpack.c.b16 %v879, %v878
        %v897 = vpack.c.b16 %v881, %v880
        %914 = vmatprep.subr.bf16.mxu0 0
        %915 = vmatpush1.bf16.msra.mxu0 %v889
        %916 = vmatprep.subr.bf16.mxu0 0
        %917 = vmatpush1.bf16.msra.mxu0 %v888
        %918 = vmatprep.subr.bf16.mxu0 0
        %919 = vmatpush1.bf16.msra.mxu0 %v887
        %920 = vmatprep.subr.bf16.mxu0 0
        %921 = vmatpush1.bf16.msra.mxu0 %v886
        %922 = vmatprep.subr.bf16.mxu0 0
        %923 = vmatpush1.bf16.msra.mxu0 %v885
        %924 = vmatprep.subr.bf16.mxu0 0
        %925 = vmatpush1.bf16.msra.mxu0 %v884
        %926 = vmatprep.subr.bf16.mxu0 0
        %927 = vmatpush1.bf16.msra.mxu0 %v883
        %928 = vmatprep.subr.bf16.mxu0 0
        %929 = vmatpush1.bf16.msra.mxu0 %v882
        %930 = vmatprep.subr.bf16.mxu0 0
        %931 = vmatpush2.bf16.msra.mxu0 %v897
        %932 = vmatprep.subr.bf16.mxu0 0
        %933 = vmatpush2.bf16.msra.mxu0 %v896
        %934 = vmatprep.subr.bf16.mxu0 0
        %935 = vmatpush2.bf16.msra.mxu0 %v895
        %936 = vmatprep.subr.bf16.mxu0 0
        %937 = vmatpush2.bf16.msra.mxu0 %v894
        %938 = vmatprep.subr.bf16.mxu0 0
        %939 = vmatpush2.bf16.msra.mxu0 %v893
        %940 = vmatprep.subr.bf16.mxu0 0
        %941 = vmatpush2.bf16.msra.mxu0 %v892
        %942 = vmatprep.subr.bf16.mxu0 0
        %943 = vmatpush2.bf16.msra.mxu0 %v891
        %944 = vmatprep.subr.bf16.mxu0 0
        %945 = vmatpush2.bf16.msra.mxu0 %v890
        %946 = vmatprep.mubr.bf16.mxu0 %v457
        %947 = vmatmul.mubr.bf16.gmra.mxu0 %v456
        %v948 = vpop.f32.mrf.mxu0
        %v949 = vadd.f32 %v816, %v948
        %v950 = vpop.f32.mrf.mxu0
        %v951 = vpop.f32.mrf.mxu0
        %v952 = vadd.f32 %v816, %v951
        %v953 = vpop.f32.mrf.mxu0
        %954 = vmatprep.mubr.bf16.mxu0 %v459
        %955 = vmatmul.mubr.bf16.gmra.mxu0 %v458
        %v956 = vpop.f32.mrf.mxu0
        %v957 = vadd.f32 %v816, %v956
        %v958 = vpop.f32.mrf.mxu0
        %v959 = vpop.f32.mrf.mxu0
        %v960 = vadd.f32 %v816, %v959
        %v961 = vpop.f32.mrf.mxu0
        %962 = vmatprep.mubr.bf16.mxu0 %v461
        %963 = vmatmul.mubr.bf16.gmra.mxu0 %v460
        %v964 = vpop.f32.mrf.mxu0
        %v965 = vadd.f32 %v816, %v964
        %v966 = vpop.f32.mrf.mxu0
        %v967 = vpop.f32.mrf.mxu0
        %v968 = vadd.f32 %v816, %v967
        %v969 = vpop.f32.mrf.mxu0
        %970 = vmatprep.mubr.bf16.mxu0 %v463
        %971 = vmatmul.mubr.bf16.gmra.mxu0 %v462
        %v972 = vpop.f32.mrf.mxu0
        %v973 = vadd.f32 %v816, %v972
        %v974 = vpop.f32.mrf.mxu0
        %v975 = vpop.f32.mrf.mxu0
        %v976 = vadd.f32 %v816, %v975
        %v977 = vpop.f32.mrf.mxu0
        %978 = vmatprep.mubr.bf16.mxu0 %v465
        %979 = vmatmul.mubr.bf16.gmra.mxu0 %v464
        %v980 = vpop.f32.mrf.mxu0
        %v981 = vadd.f32 %v816, %v980
        %v982 = vpop.f32.mrf.mxu0
        %v983 = vpop.f32.mrf.mxu0
        %v984 = vadd.f32 %v816, %v983
        %v985 = vpop.f32.mrf.mxu0
        %986 = vmatprep.mubr.bf16.mxu0 %v467
        %987 = vmatmul.mubr.bf16.gmra.mxu0 %v466
        %v988 = vpop.f32.mrf.mxu0
        %v989 = vadd.f32 %v816, %v988
        %v990 = vpop.f32.mrf.mxu0
        %v991 = vpop.f32.mrf.mxu0
        %v992 = vadd.f32 %v816, %v991
        %v993 = vpop.f32.mrf.mxu0
        %994 = vmatprep.mubr.bf16.mxu0 %v469
        %995 = vmatmul.mubr.bf16.gmra.mxu0 %v468
        %v996 = vpop.f32.mrf.mxu0
        %v997 = vadd.f32 %v816, %v996
        %v998 = vpop.f32.mrf.mxu0
        %v999 = vpop.f32.mrf.mxu0
        %v1000 = vadd.f32 %v816, %v999
        %v1001 = vpop.f32.mrf.mxu0
        %1002 = vmatprep.mubr.bf16.mxu0 %v471
        %1003 = vmatmul.mubr.bf16.gmra.mxu0 %v470
        %v1004 = vpop.f32.mrf.mxu0
        %v1005 = vadd.f32 %v816, %v1004
        %v1006 = vpop.f32.mrf.mxu0
        %v1007 = vpop.f32.mrf.mxu0
        %v1008 = vadd.f32 %v816, %v1007
        %v1009 = vpop.f32.mrf.mxu0
        %1010 = vdwg.mxu0
        %v1011 = vmax.f32 %v949, 0.0
        %v1012 = vmax.f32 %v952, 0.0
        %v1013 = vmax.f32 %v957, 0.0
        %v1014 = vmax.f32 %v960, 0.0
        %v1015 = vmax.f32 %v965, 0.0
        %v1016 = vmax.f32 %v968, 0.0
        %v1017 = vmax.f32 %v973, 0.0
        %v1018 = vmax.f32 %v976, 0.0
        %v1019 = vmax.f32 %v981, 0.0
        %v1020 = vmax.f32 %v984, 0.0
        %v1021 = vmax.f32 %v989, 0.0
        %v1022 = vmax.f32 %v992, 0.0
        %v1023 = vmax.f32 %v997, 0.0
        %v1024 = vmax.f32 %v1000, 0.0
        %v1025 = vmax.f32 %v1005, 0.0
        %v1026 = vmax.f32 %v1008, 0.0
        %v1027 = vpack.c.bf16 %v1012, %v1011
        %v1028 = vpack.c.bf16 %v1014, %v1013
        %v1029 = vpack.c.bf16 %v1016, %v1015
        %v1030 = vpack.c.bf16 %v1018, %v1017
        %v1031 = vpack.c.bf16 %v1020, %v1019
        %v1032 = vpack.c.bf16 %v1022, %v1021
        %v1033 = vpack.c.bf16 %v1024, %v1023
        %v1034 = vpack.c.bf16 %v1026, %v1025
        %v1043 = vunpack.c.l.b16 %v1027
        %v1044 = vunpack.c.h.b16 %v1027
        %v1045 = vunpack.c.l.b16 %v1028
        %v1046 = vunpack.c.h.b16 %v1028
        %v1047 = vunpack.c.l.b16 %v1029
        %v1048 = vunpack.c.h.b16 %v1029
        %v1049 = vunpack.c.l.b16 %v1030
        %v1050 = vunpack.c.h.b16 %v1030
        %v1051 = vunpack.c.l.b16 %v1031
        %v1052 = vunpack.c.h.b16 %v1031
        %v1053 = vunpack.c.l.b16 %v1032
        %v1054 = vunpack.c.h.b16 %v1032
        %v1055 = vunpack.c.l.b16 %v1033
        %v1056 = vunpack.c.h.b16 %v1033
        %v1057 = vunpack.c.l.b16 %v1034
        %v1058 = vunpack.c.h.b16 %v1034
        %v1059 = vpack.c.b16 %v1043, %v1043
        %v1060 = vpack.c.b16 %v1044, %v1044
        %v1061 = vpack.c.b16 %v1045, %v1045
        %v1062 = vpack.c.b16 %v1046, %v1046
        %v1063 = vpack.c.b16 %v1047, %v1047
        %v1064 = vpack.c.b16 %v1048, %v1048
        %v1065 = vpack.c.b16 %v1049, %v1049
        %v1066 = vpack.c.b16 %v1050, %v1050
        %v1067 = vpack.c.b16 %v1051, %v1051
        %v1068 = vpack.c.b16 %v1052, %v1052
        %v1069 = vpack.c.b16 %v1053, %v1053
        %v1070 = vpack.c.b16 %v1054, %v1054
        %v1071 = vpack.c.b16 %v1055, %v1055
        %v1072 = vpack.c.b16 %v1056, %v1056
        %v1073 = vpack.c.b16 %v1057, %v1057
        %v1074 = vpack.c.b16 %v1058, %v1058
        %s1091 = scalar_lea.vmem %s328, 64 [#allocation8]
        %1092 = vst [vmem:[%s1091] sm:$0xf] %v1059
        %1093 = vst [vmem:[%s1091 + $0x4] sm:$0xf] %v1060
        %1094 = vst [vmem:[%s1091 + $0x8] sm:$0xf] %v1061
        %1095 = vst [vmem:[%s1091 + $0xc] sm:$0xf] %v1062
        %1096 = vst [vmem:[%s1091 + $0x10] sm:$0xf] %v1063
        %1097 = vst [vmem:[%s1091 + $0x14] sm:$0xf] %v1064
        %1098 = vst [vmem:[%s1091 + $0x18] sm:$0xf] %v1065
        %1099 = vst [vmem:[%s1091 + $0x1c] sm:$0xf] %v1066
        %1100 = vst [vmem:[%s1091 + $0x20] sm:$0xf] %v1067
        %1101 = vst [vmem:[%s1091 + $0x24] sm:$0xf] %v1068
        %1102 = vst [vmem:[%s1091 + $0x28] sm:$0xf] %v1069
        %1103 = vst [vmem:[%s1091 + $0x2c] sm:$0xf] %v1070
        %1104 = vst [vmem:[%s1091 + $0x30] sm:$0xf] %v1071
        %1105 = vst [vmem:[%s1091 + $0x34] sm:$0xf] %v1072
        %1106 = vst [vmem:[%s1091 + $0x38] sm:$0xf] %v1073
        %1107 = vst [vmem:[%s1091 + $0x3c] sm:$0xf] %v1074
        %s1108 = scalar_lea.vmem [#allocation5], 256
        %v1109 = vld [vmem:[%s1108] sm:$0xf]
        %v1110 = vld [vmem:[%s1108 + $0x4] sm:$0xf]
        %v1111 = vld [vmem:[%s1108 + $0x8] sm:$0xf]
        %v1112 = vld [vmem:[%s1108 + $0xc] sm:$0xf]
        %v1113 = vld [vmem:[%s1108 + $0x10] sm:$0xf]
        %v1114 = vld [vmem:[%s1108 + $0x14] sm:$0xf]
        %v1115 = vld [vmem:[%s1108 + $0x18] sm:$0xf]
        %v1116 = vld [vmem:[%s1108 + $0x1c] sm:$0xf]
        %v1117 = vld [vmem:[%s1108 + $0x20] sm:$0xf]
        %v1118 = vld [vmem:[%s1108 + $0x24] sm:$0xf]
        %v1119 = vld [vmem:[%s1108 + $0x28] sm:$0xf]
        %v1120 = vld [vmem:[%s1108 + $0x2c] sm:$0xf]
        %v1121 = vld [vmem:[%s1108 + $0x30] sm:$0xf]
        %v1122 = vld [vmem:[%s1108 + $0x34] sm:$0xf]
        %v1123 = vld [vmem:[%s1108 + $0x38] sm:$0xf]
        %v1124 = vld [vmem:[%s1108 + $0x3c] sm:$0xf]
        %v1125 = vld [vmem:[%s1108 + $0x40] sm:$0xf]
        %v1126 = vld [vmem:[%s1108 + $0x44] sm:$0xf]
        %v1127 = vld [vmem:[%s1108 + $0x48] sm:$0xf]
        %v1128 = vld [vmem:[%s1108 + $0x4c] sm:$0xf]
        %v1129 = vld [vmem:[%s1108 + $0x50] sm:$0xf]
        %v1130 = vld [vmem:[%s1108 + $0x54] sm:$0xf]
        %v1131 = vld [vmem:[%s1108 + $0x58] sm:$0xf]
        %v1132 = vld [vmem:[%s1108 + $0x5c] sm:$0xf]
        %v1133 = vld [vmem:[%s1108 + $0x60] sm:$0xf]
        %v1134 = vld [vmem:[%s1108 + $0x64] sm:$0xf]
        %v1135 = vld [vmem:[%s1108 + $0x68] sm:$0xf]
        %v1136 = vld [vmem:[%s1108 + $0x6c] sm:$0xf]
        %v1137 = vld [vmem:[%s1108 + $0x70] sm:$0xf]
        %v1138 = vld [vmem:[%s1108 + $0x74] sm:$0xf]
        %v1139 = vld [vmem:[%s1108 + $0x78] sm:$0xf]
        %v1140 = vld [vmem:[%s1108 + $0x7c] sm:$0xf]
        %s1141 = scalar_lea.vmem [#allocation7], 2
        %v1142 = vld [vmem:[%s1141] sm:$0x1]
        %v1144 = vlaneseq
        %v1145 = vshrl.u32 %v1144, 7
        %v1146 = vsub.s32 0, %v1145
        %v1147 = vrot.slane %v1142, %v1146
        %v1181 = vunpack.c.l.b16 %v1109
        %v1182 = vunpack.c.l.b16 %v1110
        %v1183 = vunpack.c.l.b16 %v1111
        %v1184 = vunpack.c.l.b16 %v1112
        %v1185 = vunpack.c.l.b16 %v1113
        %v1186 = vunpack.c.l.b16 %v1114
        %v1187 = vunpack.c.l.b16 %v1115
        %v1188 = vunpack.c.l.b16 %v1116
        %v1189 = vunpack.c.l.b16 %v1117
        %v1190 = vunpack.c.l.b16 %v1118
        %v1191 = vunpack.c.l.b16 %v1119
        %v1192 = vunpack.c.l.b16 %v1120
        %v1193 = vunpack.c.l.b16 %v1121
        %v1194 = vunpack.c.l.b16 %v1122
        %v1195 = vunpack.c.l.b16 %v1123
        %v1196 = vunpack.c.l.b16 %v1124
        %v1197 = vunpack.c.l.b16 %v1125
        %v1198 = vunpack.c.l.b16 %v1126
        %v1199 = vunpack.c.l.b16 %v1127
        %v1200 = vunpack.c.l.b16 %v1128
        %v1201 = vunpack.c.l.b16 %v1129
        %v1202 = vunpack.c.l.b16 %v1130
        %v1203 = vunpack.c.l.b16 %v1131
        %v1204 = vunpack.c.l.b16 %v1132
        %v1205 = vunpack.c.l.b16 %v1133
        %v1206 = vunpack.c.l.b16 %v1134
        %v1207 = vunpack.c.l.b16 %v1135
        %v1208 = vunpack.c.l.b16 %v1136
        %v1209 = vunpack.c.l.b16 %v1137
        %v1210 = vunpack.c.l.b16 %v1138
        %v1211 = vunpack.c.l.b16 %v1139
        %v1212 = vunpack.c.l.b16 %v1140
        %v1213 = vpack.c.b16 %v1182, %v1181
        %v1214 = vpack.c.b16 %v1184, %v1183
        %v1215 = vpack.c.b16 %v1186, %v1185
        %v1216 = vpack.c.b16 %v1188, %v1187
        %v1217 = vpack.c.b16 %v1190, %v1189
        %v1218 = vpack.c.b16 %v1192, %v1191
        %v1219 = vpack.c.b16 %v1194, %v1193
        %v1220 = vpack.c.b16 %v1196, %v1195
        %v1221 = vpack.c.b16 %v1198, %v1197
        %v1222 = vpack.c.b16 %v1200, %v1199
        %v1223 = vpack.c.b16 %v1202, %v1201
        %v1224 = vpack.c.b16 %v1204, %v1203
        %v1225 = vpack.c.b16 %v1206, %v1205
        %v1226 = vpack.c.b16 %v1208, %v1207
        %v1227 = vpack.c.b16 %v1210, %v1209
        %v1228 = vpack.c.b16 %v1212, %v1211
        %1245 = vmatprep.subr.bf16.mxu0 0
        %1246 = vmatpush1.bf16.msra.mxu0 %v1220
        %1247 = vmatprep.subr.bf16.mxu0 0
        %1248 = vmatpush1.bf16.msra.mxu0 %v1219
        %1249 = vmatprep.subr.bf16.mxu0 0
        %1250 = vmatpush1.bf16.msra.mxu0 %v1218
        %1251 = vmatprep.subr.bf16.mxu0 0
        %1252 = vmatpush1.bf16.msra.mxu0 %v1217
        %1253 = vmatprep.subr.bf16.mxu0 0
        %1254 = vmatpush1.bf16.msra.mxu0 %v1216
        %1255 = vmatprep.subr.bf16.mxu0 0
        %1256 = vmatpush1.bf16.msra.mxu0 %v1215
        %1257 = vmatprep.subr.bf16.mxu0 0
        %1258 = vmatpush1.bf16.msra.mxu0 %v1214
        %1259 = vmatprep.subr.bf16.mxu0 0
        %1260 = vmatpush1.bf16.msra.mxu0 %v1213
        %1261 = vmatprep.subr.bf16.mxu0 0
        %1262 = vmatpush2.bf16.msra.mxu0 %v1228
        %1263 = vmatprep.subr.bf16.mxu0 0
        %1264 = vmatpush2.bf16.msra.mxu0 %v1227
        %1265 = vmatprep.subr.bf16.mxu0 0
        %1266 = vmatpush2.bf16.msra.mxu0 %v1226
        %1267 = vmatprep.subr.bf16.mxu0 0
        %1268 = vmatpush2.bf16.msra.mxu0 %v1225
        %1269 = vmatprep.subr.bf16.mxu0 0
        %1270 = vmatpush2.bf16.msra.mxu0 %v1224
        %1271 = vmatprep.subr.bf16.mxu0 0
        %1272 = vmatpush2.bf16.msra.mxu0 %v1223
        %1273 = vmatprep.subr.bf16.mxu0 0
        %1274 = vmatpush2.bf16.msra.mxu0 %v1222
        %1275 = vmatprep.subr.bf16.mxu0 0
        %1276 = vmatpush2.bf16.msra.mxu0 %v1221
        %1277 = vmatprep.mubr.bf16.mxu0 %v457
        %1278 = vmatmul.mubr.bf16.gmra.mxu0 %v456
        %v1279 = vpop.f32.mrf.mxu0
        %v1280 = vadd.f32 %v1147, %v1279
        %v1281 = vpop.f32.mrf.mxu0
        %v1282 = vpop.f32.mrf.mxu0
        %v1283 = vadd.f32 %v1147, %v1282
        %v1284 = vpop.f32.mrf.mxu0
        %1285 = vmatprep.mubr.bf16.mxu0 %v459
        %1286 = vmatmul.mubr.bf16.gmra.mxu0 %v458
        %v1287 = vpop.f32.mrf.mxu0
        %v1288 = vadd.f32 %v1147, %v1287
        %v1289 = vpop.f32.mrf.mxu0
        %v1290 = vpop.f32.mrf.mxu0
        %v1291 = vadd.f32 %v1147, %v1290
        %v1292 = vpop.f32.mrf.mxu0
        %1293 = vmatprep.mubr.bf16.mxu0 %v461
        %1294 = vmatmul.mubr.bf16.gmra.mxu0 %v460
        %v1295 = vpop.f32.mrf.mxu0
        %v1296 = vadd.f32 %v1147, %v1295
        %v1297 = vpop.f32.mrf.mxu0
        %v1298 = vpop.f32.mrf.mxu0
        %v1299 = vadd.f32 %v1147, %v1298
        %v1300 = vpop.f32.mrf.mxu0
        %1301 = vmatprep.mubr.bf16.mxu0 %v463
        %1302 = vmatmul.mubr.bf16.gmra.mxu0 %v462
        %v1303 = vpop.f32.mrf.mxu0
        %v1304 = vadd.f32 %v1147, %v1303
        %v1305 = vpop.f32.mrf.mxu0
        %v1306 = vpop.f32.mrf.mxu0
        %v1307 = vadd.f32 %v1147, %v1306
        %v1308 = vpop.f32.mrf.mxu0
        %1309 = vmatprep.mubr.bf16.mxu0 %v465
        %1310 = vmatmul.mubr.bf16.gmra.mxu0 %v464
        %v1311 = vpop.f32.mrf.mxu0
        %v1312 = vadd.f32 %v1147, %v1311
        %v1313 = vpop.f32.mrf.mxu0
        %v1314 = vpop.f32.mrf.mxu0
        %v1315 = vadd.f32 %v1147, %v1314
        %v1316 = vpop.f32.mrf.mxu0
        %1317 = vmatprep.mubr.bf16.mxu0 %v467
        %1318 = vmatmul.mubr.bf16.gmra.mxu0 %v466
        %v1319 = vpop.f32.mrf.mxu0
        %v1320 = vadd.f32 %v1147, %v1319
        %v1321 = vpop.f32.mrf.mxu0
        %v1322 = vpop.f32.mrf.mxu0
        %v1323 = vadd.f32 %v1147, %v1322
        %v1324 = vpop.f32.mrf.mxu0
        %1325 = vmatprep.mubr.bf16.mxu0 %v469
        %1326 = vmatmul.mubr.bf16.gmra.mxu0 %v468
        %v1327 = vpop.f32.mrf.mxu0
        %v1328 = vadd.f32 %v1147, %v1327
        %v1329 = vpop.f32.mrf.mxu0
        %v1330 = vpop.f32.mrf.mxu0
        %v1331 = vadd.f32 %v1147, %v1330
        %v1332 = vpop.f32.mrf.mxu0
        %1333 = vmatprep.mubr.bf16.mxu0 %v471
        %1334 = vmatmul.mubr.bf16.gmra.mxu0 %v470
        %v1335 = vpop.f32.mrf.mxu0
        %v1336 = vadd.f32 %v1147, %v1335
        %v1337 = vpop.f32.mrf.mxu0
        %v1338 = vpop.f32.mrf.mxu0
        %v1339 = vadd.f32 %v1147, %v1338
        %v1340 = vpop.f32.mrf.mxu0
        %1341 = vdwg.mxu0
        %v1342 = vmax.f32 %v1280, 0.0
        %v1343 = vmax.f32 %v1283, 0.0
        %v1344 = vmax.f32 %v1288, 0.0
        %v1345 = vmax.f32 %v1291, 0.0
        %v1346 = vmax.f32 %v1296, 0.0
        %v1347 = vmax.f32 %v1299, 0.0
        %v1348 = vmax.f32 %v1304, 0.0
        %v1349 = vmax.f32 %v1307, 0.0
        %v1350 = vmax.f32 %v1312, 0.0
        %v1351 = vmax.f32 %v1315, 0.0
        %v1352 = vmax.f32 %v1320, 0.0
        %v1353 = vmax.f32 %v1323, 0.0
        %v1354 = vmax.f32 %v1328, 0.0
        %v1355 = vmax.f32 %v1331, 0.0
        %v1356 = vmax.f32 %v1336, 0.0
        %v1357 = vmax.f32 %v1339, 0.0
        %v1358 = vpack.c.bf16 %v1343, %v1342
        %v1359 = vpack.c.bf16 %v1345, %v1344
        %v1360 = vpack.c.bf16 %v1347, %v1346
        %v1361 = vpack.c.bf16 %v1349, %v1348
        %v1362 = vpack.c.bf16 %v1351, %v1350
        %v1363 = vpack.c.bf16 %v1353, %v1352
        %v1364 = vpack.c.bf16 %v1355, %v1354
        %v1365 = vpack.c.bf16 %v1357, %v1356
        %v1374 = vunpack.c.l.b16 %v1358
        %v1375 = vunpack.c.h.b16 %v1358
        %v1376 = vunpack.c.l.b16 %v1359
        %v1377 = vunpack.c.h.b16 %v1359
        %v1378 = vunpack.c.l.b16 %v1360
        %v1379 = vunpack.c.h.b16 %v1360
        %v1380 = vunpack.c.l.b16 %v1361
        %v1381 = vunpack.c.h.b16 %v1361
        %v1382 = vunpack.c.l.b16 %v1362
        %v1383 = vunpack.c.h.b16 %v1362
        %v1384 = vunpack.c.l.b16 %v1363
        %v1385 = vunpack.c.h.b16 %v1363
        %v1386 = vunpack.c.l.b16 %v1364
        %v1387 = vunpack.c.h.b16 %v1364
        %v1388 = vunpack.c.l.b16 %v1365
        %v1389 = vunpack.c.h.b16 %v1365
        %v1390 = vpack.c.b16 %v1374, %v1374
        %v1391 = vpack.c.b16 %v1375, %v1375
        %v1392 = vpack.c.b16 %v1376, %v1376
        %v1393 = vpack.c.b16 %v1377, %v1377
        %v1394 = vpack.c.b16 %v1378, %v1378
        %v1395 = vpack.c.b16 %v1379, %v1379
        %v1396 = vpack.c.b16 %v1380, %v1380
        %v1397 = vpack.c.b16 %v1381, %v1381
        %v1398 = vpack.c.b16 %v1382, %v1382
        %v1399 = vpack.c.b16 %v1383, %v1383
        %v1400 = vpack.c.b16 %v1384, %v1384
        %v1401 = vpack.c.b16 %v1385, %v1385
        %v1402 = vpack.c.b16 %v1386, %v1386
        %v1403 = vpack.c.b16 %v1387, %v1387
        %v1404 = vpack.c.b16 %v1388, %v1388
        %v1405 = vpack.c.b16 %v1389, %v1389
        %1422 = vst [vmem:[%s335] sm:$0xf] %v1390
        %1423 = vst [vmem:[%s335 + $0x4] sm:$0xf] %v1391
        %1424 = vst [vmem:[%s335 + $0x8] sm:$0xf] %v1392
        %1425 = vst [vmem:[%s335 + $0xc] sm:$0xf] %v1393
        %1426 = vst [vmem:[%s335 + $0x10] sm:$0xf] %v1394
        %1427 = vst [vmem:[%s335 + $0x14] sm:$0xf] %v1395
        %1428 = vst [vmem:[%s335 + $0x18] sm:$0xf] %v1396
        %1429 = vst [vmem:[%s335 + $0x1c] sm:$0xf] %v1397
        %1430 = vst [vmem:[%s335 + $0x20] sm:$0xf] %v1398
        %1431 = vst [vmem:[%s335 + $0x24] sm:$0xf] %v1399
        %1432 = vst [vmem:[%s335 + $0x28] sm:$0xf] %v1400
        %1433 = vst [vmem:[%s335 + $0x2c] sm:$0xf] %v1401
        %1434 = vst [vmem:[%s335 + $0x30] sm:$0xf] %v1402
        %1435 = vst [vmem:[%s335 + $0x34] sm:$0xf] %v1403
        %1436 = vst [vmem:[%s335 + $0x38] sm:$0xf] %v1404
        %1437 = vst [vmem:[%s335 + $0x3c] sm:$0xf] %v1405
        %s1438 = scalar_lea.vmem [#allocation5], 384
        %v1439 = vld [vmem:[%s1438] sm:$0xf]
        %v1440 = vld [vmem:[%s1438 + $0x4] sm:$0xf]
        %v1441 = vld [vmem:[%s1438 + $0x8] sm:$0xf]
        %v1442 = vld [vmem:[%s1438 + $0xc] sm:$0xf]
        %v1443 = vld [vmem:[%s1438 + $0x10] sm:$0xf]
        %v1444 = vld [vmem:[%s1438 + $0x14] sm:$0xf]
        %v1445 = vld [vmem:[%s1438 + $0x18] sm:$0xf]
        %v1446 = vld [vmem:[%s1438 + $0x1c] sm:$0xf]
        %v1447 = vld [vmem:[%s1438 + $0x20] sm:$0xf]
        %v1448 = vld [vmem:[%s1438 + $0x24] sm:$0xf]
        %v1449 = vld [vmem:[%s1438 + $0x28] sm:$0xf]
        %v1450 = vld [vmem:[%s1438 + $0x2c] sm:$0xf]
        %v1451 = vld [vmem:[%s1438 + $0x30] sm:$0xf]
        %v1452 = vld [vmem:[%s1438 + $0x34] sm:$0xf]
        %v1453 = vld [vmem:[%s1438 + $0x38] sm:$0xf]
        %v1454 = vld [vmem:[%s1438 + $0x3c] sm:$0xf]
        %v1455 = vld [vmem:[%s1438 + $0x40] sm:$0xf]
        %v1456 = vld [vmem:[%s1438 + $0x44] sm:$0xf]
        %v1457 = vld [vmem:[%s1438 + $0x48] sm:$0xf]
        %v1458 = vld [vmem:[%s1438 + $0x4c] sm:$0xf]
        %v1459 = vld [vmem:[%s1438 + $0x50] sm:$0xf]
        %v1460 = vld [vmem:[%s1438 + $0x54] sm:$0xf]
        %v1461 = vld [vmem:[%s1438 + $0x58] sm:$0xf]
        %v1462 = vld [vmem:[%s1438 + $0x5c] sm:$0xf]
        %v1463 = vld [vmem:[%s1438 + $0x60] sm:$0xf]
        %v1464 = vld [vmem:[%s1438 + $0x64] sm:$0xf]
        %v1465 = vld [vmem:[%s1438 + $0x68] sm:$0xf]
        %v1466 = vld [vmem:[%s1438 + $0x6c] sm:$0xf]
        %v1467 = vld [vmem:[%s1438 + $0x70] sm:$0xf]
        %v1468 = vld [vmem:[%s1438 + $0x74] sm:$0xf]
        %v1469 = vld [vmem:[%s1438 + $0x78] sm:$0xf]
        %v1470 = vld [vmem:[%s1438 + $0x7c] sm:$0xf]
        %s1471 = scalar_lea.vmem [#allocation7], 3
        %v1472 = vld [vmem:[%s1471] sm:$0x1]
        %v1474 = vlaneseq
        %v1475 = vshrl.u32 %v1474, 7
        %v1476 = vsub.s32 0, %v1475
        %v1477 = vrot.slane %v1472, %v1476
        %v1511 = vunpack.c.l.b16 %v1439
        %v1512 = vunpack.c.l.b16 %v1440
        %v1513 = vunpack.c.l.b16 %v1441
        %v1514 = vunpack.c.l.b16 %v1442
        %v1515 = vunpack.c.l.b16 %v1443
        %v1516 = vunpack.c.l.b16 %v1444
        %v1517 = vunpack.c.l.b16 %v1445
        %v1518 = vunpack.c.l.b16 %v1446
        %v1519 = vunpack.c.l.b16 %v1447
        %v1520 = vunpack.c.l.b16 %v1448
        %v1521 = vunpack.c.l.b16 %v1449
        %v1522 = vunpack.c.l.b16 %v1450
        %v1523 = vunpack.c.l.b16 %v1451
        %v1524 = vunpack.c.l.b16 %v1452
        %v1525 = vunpack.c.l.b16 %v1453
        %v1526 = vunpack.c.l.b16 %v1454
        %v1527 = vunpack.c.l.b16 %v1455
        %v1528 = vunpack.c.l.b16 %v1456
        %v1529 = vunpack.c.l.b16 %v1457
        %v1530 = vunpack.c.l.b16 %v1458
        %v1531 = vunpack.c.l.b16 %v1459
        %v1532 = vunpack.c.l.b16 %v1460
        %v1533 = vunpack.c.l.b16 %v1461
        %v1534 = vunpack.c.l.b16 %v1462
        %v1535 = vunpack.c.l.b16 %v1463
        %v1536 = vunpack.c.l.b16 %v1464
        %v1537 = vunpack.c.l.b16 %v1465
        %v1538 = vunpack.c.l.b16 %v1466
        %v1539 = vunpack.c.l.b16 %v1467
        %v1540 = vunpack.c.l.b16 %v1468
        %v1541 = vunpack.c.l.b16 %v1469
        %v1542 = vunpack.c.l.b16 %v1470
        %v1543 = vpack.c.b16 %v1512, %v1511
        %v1544 = vpack.c.b16 %v1514, %v1513
        %v1545 = vpack.c.b16 %v1516, %v1515
        %v1546 = vpack.c.b16 %v1518, %v1517
        %v1547 = vpack.c.b16 %v1520, %v1519
        %v1548 = vpack.c.b16 %v1522, %v1521
        %v1549 = vpack.c.b16 %v1524, %v1523
        %v1550 = vpack.c.b16 %v1526, %v1525
        %v1551 = vpack.c.b16 %v1528, %v1527
        %v1552 = vpack.c.b16 %v1530, %v1529
        %v1553 = vpack.c.b16 %v1532, %v1531
        %v1554 = vpack.c.b16 %v1534, %v1533
        %v1555 = vpack.c.b16 %v1536, %v1535
        %v1556 = vpack.c.b16 %v1538, %v1537
        %v1557 = vpack.c.b16 %v1540, %v1539
        %v1558 = vpack.c.b16 %v1542, %v1541
        %1575 = vmatprep.subr.bf16.mxu0 0
        %1576 = vmatpush1.bf16.msra.mxu0 %v1550
        %1577 = vmatprep.subr.bf16.mxu0 0
        %1578 = vmatpush1.bf16.msra.mxu0 %v1549
        %1579 = vmatprep.subr.bf16.mxu0 0
        %1580 = vmatpush1.bf16.msra.mxu0 %v1548
        %1581 = vmatprep.subr.bf16.mxu0 0
        %1582 = vmatpush1.bf16.msra.mxu0 %v1547
        %1583 = vmatprep.subr.bf16.mxu0 0
        %1584 = vmatpush1.bf16.msra.mxu0 %v1546
        %1585 = vmatprep.subr.bf16.mxu0 0
        %1586 = vmatpush1.bf16.msra.mxu0 %v1545
        %1587 = vmatprep.subr.bf16.mxu0 0
        %1588 = vmatpush1.bf16.msra.mxu0 %v1544
        %1589 = vmatprep.subr.bf16.mxu0 0
        %1590 = vmatpush1.bf16.msra.mxu0 %v1543
        %1591 = vmatprep.subr.bf16.mxu0 0
        %1592 = vmatpush2.bf16.msra.mxu0 %v1558
        %1593 = vmatprep.subr.bf16.mxu0 0
        %1594 = vmatpush2.bf16.msra.mxu0 %v1557
        %1595 = vmatprep.subr.bf16.mxu0 0
        %1596 = vmatpush2.bf16.msra.mxu0 %v1556
        %1597 = vmatprep.subr.bf16.mxu0 0
        %1598 = vmatpush2.bf16.msra.mxu0 %v1555
        %1599 = vmatprep.subr.bf16.mxu0 0
        %1600 = vmatpush2.bf16.msra.mxu0 %v1554
        %1601 = vmatprep.subr.bf16.mxu0 0
        %1602 = vmatpush2.bf16.msra.mxu0 %v1553
        %1603 = vmatprep.subr.bf16.mxu0 0
        %1604 = vmatpush2.bf16.msra.mxu0 %v1552
        %1605 = vmatprep.subr.bf16.mxu0 0
        %1606 = vmatpush2.bf16.msra.mxu0 %v1551
        %1607 = vmatprep.mubr.bf16.mxu0 %v457
        %1608 = vmatmul.mubr.bf16.gmra.mxu0 %v456
        %v1609 = vpop.f32.mrf.mxu0
        %v1610 = vadd.f32 %v1477, %v1609
        %v1611 = vpop.f32.mrf.mxu0
        %v1612 = vpop.f32.mrf.mxu0
        %v1613 = vadd.f32 %v1477, %v1612
        %v1614 = vpop.f32.mrf.mxu0
        %1615 = vmatprep.mubr.bf16.mxu0 %v459
        %1616 = vmatmul.mubr.bf16.gmra.mxu0 %v458
        %v1617 = vpop.f32.mrf.mxu0
        %v1618 = vadd.f32 %v1477, %v1617
        %v1619 = vpop.f32.mrf.mxu0
        %v1620 = vpop.f32.mrf.mxu0
        %v1621 = vadd.f32 %v1477, %v1620
        %v1622 = vpop.f32.mrf.mxu0
        %1623 = vmatprep.mubr.bf16.mxu0 %v461
        %1624 = vmatmul.mubr.bf16.gmra.mxu0 %v460
        %v1625 = vpop.f32.mrf.mxu0
        %v1626 = vadd.f32 %v1477, %v1625
        %v1627 = vpop.f32.mrf.mxu0
        %v1628 = vpop.f32.mrf.mxu0
        %v1629 = vadd.f32 %v1477, %v1628
        %v1630 = vpop.f32.mrf.mxu0
        %1631 = vmatprep.mubr.bf16.mxu0 %v463
        %1632 = vmatmul.mubr.bf16.gmra.mxu0 %v462
        %v1633 = vpop.f32.mrf.mxu0
        %v1634 = vadd.f32 %v1477, %v1633
        %v1635 = vpop.f32.mrf.mxu0
        %v1636 = vpop.f32.mrf.mxu0
        %v1637 = vadd.f32 %v1477, %v1636
        %v1638 = vpop.f32.mrf.mxu0
        %1639 = vmatprep.mubr.bf16.mxu0 %v465
        %1640 = vmatmul.mubr.bf16.gmra.mxu0 %v464
        %v1641 = vpop.f32.mrf.mxu0
        %v1642 = vadd.f32 %v1477, %v1641
        %v1643 = vpop.f32.mrf.mxu0
        %v1644 = vpop.f32.mrf.mxu0
        %v1645 = vadd.f32 %v1477, %v1644
        %v1646 = vpop.f32.mrf.mxu0
        %1647 = vmatprep.mubr.bf16.mxu0 %v467
        %1648 = vmatmul.mubr.bf16.gmra.mxu0 %v466
        %v1649 = vpop.f32.mrf.mxu0
        %v1650 = vadd.f32 %v1477, %v1649
        %v1651 = vpop.f32.mrf.mxu0
        %v1652 = vpop.f32.mrf.mxu0
        %v1653 = vadd.f32 %v1477, %v1652
        %v1654 = vpop.f32.mrf.mxu0
        %1655 = vmatprep.mubr.bf16.mxu0 %v469
        %1656 = vmatmul.mubr.bf16.gmra.mxu0 %v468
        %v1657 = vpop.f32.mrf.mxu0
        %v1658 = vadd.f32 %v1477, %v1657
        %v1659 = vpop.f32.mrf.mxu0
        %v1660 = vpop.f32.mrf.mxu0
        %v1661 = vadd.f32 %v1477, %v1660
        %v1662 = vpop.f32.mrf.mxu0
        %1663 = vmatprep.mubr.bf16.mxu0 %v471
        %1664 = vmatmul.mubr.bf16.gmra.mxu0 %v470
        %v1665 = vpop.f32.mrf.mxu0
        %v1666 = vadd.f32 %v1477, %v1665
        %v1667 = vpop.f32.mrf.mxu0
        %v1668 = vpop.f32.mrf.mxu0
        %v1669 = vadd.f32 %v1477, %v1668
        %v1670 = vpop.f32.mrf.mxu0
        %1671 = vdwg.mxu0
        %v1672 = vmax.f32 %v1610, 0.0
        %v1673 = vmax.f32 %v1613, 0.0
        %v1674 = vmax.f32 %v1618, 0.0
        %v1675 = vmax.f32 %v1621, 0.0
        %v1676 = vmax.f32 %v1626, 0.0
        %v1677 = vmax.f32 %v1629, 0.0
        %v1678 = vmax.f32 %v1634, 0.0
        %v1679 = vmax.f32 %v1637, 0.0
        %v1680 = vmax.f32 %v1642, 0.0
        %v1681 = vmax.f32 %v1645, 0.0
        %v1682 = vmax.f32 %v1650, 0.0
        %v1683 = vmax.f32 %v1653, 0.0
        %v1684 = vmax.f32 %v1658, 0.0
        %v1685 = vmax.f32 %v1661, 0.0
        %v1686 = vmax.f32 %v1666, 0.0
        %v1687 = vmax.f32 %v1669, 0.0
        %v1688 = vpack.c.bf16 %v1673, %v1672
        %v1689 = vpack.c.bf16 %v1675, %v1674
        %v1690 = vpack.c.bf16 %v1677, %v1676
        %v1691 = vpack.c.bf16 %v1679, %v1678
        %v1692 = vpack.c.bf16 %v1681, %v1680
        %v1693 = vpack.c.bf16 %v1683, %v1682
        %v1694 = vpack.c.bf16 %v1685, %v1684
        %v1695 = vpack.c.bf16 %v1687, %v1686
        %v1704 = vunpack.c.l.b16 %v1688
        %v1705 = vunpack.c.h.b16 %v1688
        %v1706 = vunpack.c.l.b16 %v1689
        %v1707 = vunpack.c.h.b16 %v1689
        %v1708 = vunpack.c.l.b16 %v1690
        %v1709 = vunpack.c.h.b16 %v1690
        %v1710 = vunpack.c.l.b16 %v1691
        %v1711 = vunpack.c.h.b16 %v1691
        %v1712 = vunpack.c.l.b16 %v1692
        %v1713 = vunpack.c.h.b16 %v1692
        %v1714 = vunpack.c.l.b16 %v1693
        %v1715 = vunpack.c.h.b16 %v1693
        %v1716 = vunpack.c.l.b16 %v1694
        %v1717 = vunpack.c.h.b16 %v1694
        %v1718 = vunpack.c.l.b16 %v1695
        %v1719 = vunpack.c.h.b16 %v1695
        %v1720 = vpack.c.b16 %v1704, %v1704
        %v1721 = vpack.c.b16 %v1705, %v1705
        %v1722 = vpack.c.b16 %v1706, %v1706
        %v1723 = vpack.c.b16 %v1707, %v1707
        %v1724 = vpack.c.b16 %v1708, %v1708
        %v1725 = vpack.c.b16 %v1709, %v1709
        %v1726 = vpack.c.b16 %v1710, %v1710
        %v1727 = vpack.c.b16 %v1711, %v1711
        %v1728 = vpack.c.b16 %v1712, %v1712
        %v1729 = vpack.c.b16 %v1713, %v1713
        %v1730 = vpack.c.b16 %v1714, %v1714
        %v1731 = vpack.c.b16 %v1715, %v1715
        %v1732 = vpack.c.b16 %v1716, %v1716
        %v1733 = vpack.c.b16 %v1717, %v1717
        %v1734 = vpack.c.b16 %v1718, %v1718
        %v1735 = vpack.c.b16 %v1719, %v1719
        %s1752 = scalar_lea.vmem %s335, 64 [#allocation9]
        %1753 = vst [vmem:[%s1752] sm:$0xf] %v1720
        %1754 = vst [vmem:[%s1752 + $0x4] sm:$0xf] %v1721
        %1755 = vst [vmem:[%s1752 + $0x8] sm:$0xf] %v1722
        %1756 = vst [vmem:[%s1752 + $0xc] sm:$0xf] %v1723
        %1757 = vst [vmem:[%s1752 + $0x10] sm:$0xf] %v1724
        %1758 = vst [vmem:[%s1752 + $0x14] sm:$0xf] %v1725
        %1759 = vst [vmem:[%s1752 + $0x18] sm:$0xf] %v1726
        %1760 = vst [vmem:[%s1752 + $0x1c] sm:$0xf] %v1727
        %1761 = vst [vmem:[%s1752 + $0x20] sm:$0xf] %v1728
        %1762 = vst [vmem:[%s1752 + $0x24] sm:$0xf] %v1729
        %1763 = vst [vmem:[%s1752 + $0x28] sm:$0xf] %v1730
        %1764 = vst [vmem:[%s1752 + $0x2c] sm:$0xf] %v1731
        %1765 = vst [vmem:[%s1752 + $0x30] sm:$0xf] %v1732
        %1766 = vst [vmem:[%s1752 + $0x34] sm:$0xf] %v1733
        %1767 = vst [vmem:[%s1752 + $0x38] sm:$0xf] %v1734
        %1768 = vst [vmem:[%s1752 + $0x3c] sm:$0xf] %v1735
        %s1769 = scalar_lea.vmem [#allocation5], 512
        %v1770 = vld [vmem:[%s1769] sm:$0xf]
        %v1771 = vld [vmem:[%s1769 + $0x4] sm:$0xf]
        %v1772 = vld [vmem:[%s1769 + $0x8] sm:$0xf]
        %v1773 = vld [vmem:[%s1769 + $0xc] sm:$0xf]
        %v1774 = vld [vmem:[%s1769 + $0x10] sm:$0xf]
        %v1775 = vld [vmem:[%s1769 + $0x14] sm:$0xf]
        %v1776 = vld [vmem:[%s1769 + $0x18] sm:$0xf]
        %v1777 = vld [vmem:[%s1769 + $0x1c] sm:$0xf]
        %v1778 = vld [vmem:[%s1769 + $0x20] sm:$0xf]
        %v1779 = vld [vmem:[%s1769 + $0x24] sm:$0xf]
        %v1780 = vld [vmem:[%s1769 + $0x28] sm:$0xf]
        %v1781 = vld [vmem:[%s1769 + $0x2c] sm:$0xf]
        %v1782 = vld [vmem:[%s1769 + $0x30] sm:$0xf]
        %v1783 = vld [vmem:[%s1769 + $0x34] sm:$0xf]
        %v1784 = vld [vmem:[%s1769 + $0x38] sm:$0xf]
        %v1785 = vld [vmem:[%s1769 + $0x3c] sm:$0xf]
        %v1786 = vld [vmem:[%s1769 + $0x40] sm:$0xf]
        %v1787 = vld [vmem:[%s1769 + $0x44] sm:$0xf]
        %v1788 = vld [vmem:[%s1769 + $0x48] sm:$0xf]
        %v1789 = vld [vmem:[%s1769 + $0x4c] sm:$0xf]
        %v1790 = vld [vmem:[%s1769 + $0x50] sm:$0xf]
        %v1791 = vld [vmem:[%s1769 + $0x54] sm:$0xf]
        %v1792 = vld [vmem:[%s1769 + $0x58] sm:$0xf]
        %v1793 = vld [vmem:[%s1769 + $0x5c] sm:$0xf]
        %v1794 = vld [vmem:[%s1769 + $0x60] sm:$0xf]
        %v1795 = vld [vmem:[%s1769 + $0x64] sm:$0xf]
        %v1796 = vld [vmem:[%s1769 + $0x68] sm:$0xf]
        %v1797 = vld [vmem:[%s1769 + $0x6c] sm:$0xf]
        %v1798 = vld [vmem:[%s1769 + $0x70] sm:$0xf]
        %v1799 = vld [vmem:[%s1769 + $0x74] sm:$0xf]
        %v1800 = vld [vmem:[%s1769 + $0x78] sm:$0xf]
        %v1801 = vld [vmem:[%s1769 + $0x7c] sm:$0xf]
        %s1802 = scalar_lea.vmem [#allocation7], 4
        %v1803 = vld [vmem:[%s1802] sm:$0x1]
        %v1805 = vlaneseq
        %v1806 = vshrl.u32 %v1805, 7
        %v1807 = vsub.s32 0, %v1806
        %v1808 = vrot.slane %v1803, %v1807
        %v1842 = vunpack.c.l.b16 %v1770
        %v1843 = vunpack.c.l.b16 %v1771
        %v1844 = vunpack.c.l.b16 %v1772
        %v1845 = vunpack.c.l.b16 %v1773
        %v1846 = vunpack.c.l.b16 %v1774
        %v1847 = vunpack.c.l.b16 %v1775
        %v1848 = vunpack.c.l.b16 %v1776
        %v1849 = vunpack.c.l.b16 %v1777
        %v1850 = vunpack.c.l.b16 %v1778
        %v1851 = vunpack.c.l.b16 %v1779
        %v1852 = vunpack.c.l.b16 %v1780
        %v1853 = vunpack.c.l.b16 %v1781
        %v1854 = vunpack.c.l.b16 %v1782
        %v1855 = vunpack.c.l.b16 %v1783
        %v1856 = vunpack.c.l.b16 %v1784
        %v1857 = vunpack.c.l.b16 %v1785
        %v1858 = vunpack.c.l.b16 %v1786
        %v1859 = vunpack.c.l.b16 %v1787
        %v1860 = vunpack.c.l.b16 %v1788
        %v1861 = vunpack.c.l.b16 %v1789
        %v1862 = vunpack.c.l.b16 %v1790
        %v1863 = vunpack.c.l.b16 %v1791
        %v1864 = vunpack.c.l.b16 %v1792
        %v1865 = vunpack.c.l.b16 %v1793
        %v1866 = vunpack.c.l.b16 %v1794
        %v1867 = vunpack.c.l.b16 %v1795
        %v1868 = vunpack.c.l.b16 %v1796
        %v1869 = vunpack.c.l.b16 %v1797
        %v1870 = vunpack.c.l.b16 %v1798
        %v1871 = vunpack.c.l.b16 %v1799
        %v1872 = vunpack.c.l.b16 %v1800
        %v1873 = vunpack.c.l.b16 %v1801
        %v1874 = vpack.c.b16 %v1843, %v1842
        %v1875 = vpack.c.b16 %v1845, %v1844
        %v1876 = vpack.c.b16 %v1847, %v1846
        %v1877 = vpack.c.b16 %v1849, %v1848
        %v1878 = vpack.c.b16 %v1851, %v1850
        %v1879 = vpack.c.b16 %v1853, %v1852
        %v1880 = vpack.c.b16 %v1855, %v1854
        %v1881 = vpack.c.b16 %v1857, %v1856
        %v1882 = vpack.c.b16 %v1859, %v1858
        %v1883 = vpack.c.b16 %v1861, %v1860
        %v1884 = vpack.c.b16 %v1863, %v1862
        %v1885 = vpack.c.b16 %v1865, %v1864
        %v1886 = vpack.c.b16 %v1867, %v1866
        %v1887 = vpack.c.b16 %v1869, %v1868
        %v1888 = vpack.c.b16 %v1871, %v1870
        %v1889 = vpack.c.b16 %v1873, %v1872
        %1906 = vmatprep.subr.bf16.mxu0 0
        %1907 = vmatpush1.bf16.msra.mxu0 %v1881
        %1908 = vmatprep.subr.bf16.mxu0 0
        %1909 = vmatpush1.bf16.msra.mxu0 %v1880
        %1910 = vmatprep.subr.bf16.mxu0 0
        %1911 = vmatpush1.bf16.msra.mxu0 %v1879
        %1912 = vmatprep.subr.bf16.mxu0 0
        %1913 = vmatpush1.bf16.msra.mxu0 %v1878
        %1914 = vmatprep.subr.bf16.mxu0 0
        %1915 = vmatpush1.bf16.msra.mxu0 %v1877
        %1916 = vmatprep.subr.bf16.mxu0 0
        %1917 = vmatpush1.bf16.msra.mxu0 %v1876
        %1918 = vmatprep.subr.bf16.mxu0 0
        %1919 = vmatpush1.bf16.msra.mxu0 %v1875
        %1920 = vmatprep.subr.bf16.mxu0 0
        %1921 = vmatpush1.bf16.msra.mxu0 %v1874
        %1922 = vmatprep.subr.bf16.mxu0 0
        %1923 = vmatpush2.bf16.msra.mxu0 %v1889
        %1924 = vmatprep.subr.bf16.mxu0 0
        %1925 = vmatpush2.bf16.msra.mxu0 %v1888
        %1926 = vmatprep.subr.bf16.mxu0 0
        %1927 = vmatpush2.bf16.msra.mxu0 %v1887
        %1928 = vmatprep.subr.bf16.mxu0 0
        %1929 = vmatpush2.bf16.msra.mxu0 %v1886
        %1930 = vmatprep.subr.bf16.mxu0 0
        %1931 = vmatpush2.bf16.msra.mxu0 %v1885
        %1932 = vmatprep.subr.bf16.mxu0 0
        %1933 = vmatpush2.bf16.msra.mxu0 %v1884
        %1934 = vmatprep.subr.bf16.mxu0 0
        %1935 = vmatpush2.bf16.msra.mxu0 %v1883
        %1936 = vmatprep.subr.bf16.mxu0 0
        %1937 = vmatpush2.bf16.msra.mxu0 %v1882
        %1938 = vmatprep.mubr.bf16.mxu0 %v457
        %1939 = vmatmul.mubr.bf16.gmra.mxu0 %v456
        %v1940 = vpop.f32.mrf.mxu0
        %v1941 = vadd.f32 %v1808, %v1940
        %v1942 = vpop.f32.mrf.mxu0
        %v1943 = vpop.f32.mrf.mxu0
        %v1944 = vadd.f32 %v1808, %v1943
        %v1945 = vpop.f32.mrf.mxu0
        %1946 = vmatprep.mubr.bf16.mxu0 %v459
        %1947 = vmatmul.mubr.bf16.gmra.mxu0 %v458
        %v1948 = vpop.f32.mrf.mxu0
        %v1949 = vadd.f32 %v1808, %v1948
        %v1950 = vpop.f32.mrf.mxu0
        %v1951 = vpop.f32.mrf.mxu0
        %v1952 = vadd.f32 %v1808, %v1951
        %v1953 = vpop.f32.mrf.mxu0
        %1954 = vmatprep.mubr.bf16.mxu0 %v461
        %1955 = vmatmul.mubr.bf16.gmra.mxu0 %v460
        %v1956 = vpop.f32.mrf.mxu0
        %v1957 = vadd.f32 %v1808, %v1956
        %v1958 = vpop.f32.mrf.mxu0
        %v1959 = vpop.f32.mrf.mxu0
        %v1960 = vadd.f32 %v1808, %v1959
        %v1961 = vpop.f32.mrf.mxu0
        %1962 = vmatprep.mubr.bf16.mxu0 %v463
        %1963 = vmatmul.mubr.bf16.gmra.mxu0 %v462
        %v1964 = vpop.f32.mrf.mxu0
        %v1965 = vadd.f32 %v1808, %v1964
        %v1966 = vpop.f32.mrf.mxu0
        %v1967 = vpop.f32.mrf.mxu0
        %v1968 = vadd.f32 %v1808, %v1967
        %v1969 = vpop.f32.mrf.mxu0
        %1970 = vmatprep.mubr.bf16.mxu0 %v465
        %1971 = vmatmul.mubr.bf16.gmra.mxu0 %v464
        %v1972 = vpop.f32.mrf.mxu0
        %v1973 = vadd.f32 %v1808, %v1972
        %v1974 = vpop.f32.mrf.mxu0
        %v1975 = vpop.f32.mrf.mxu0
        %v1976 = vadd.f32 %v1808, %v1975
        %v1977 = vpop.f32.mrf.mxu0
        %1978 = vmatprep.mubr.bf16.mxu0 %v467
        %1979 = vmatmul.mubr.bf16.gmra.mxu0 %v466
        %v1980 = vpop.f32.mrf.mxu0
        %v1981 = vadd.f32 %v1808, %v1980
        %v1982 = vpop.f32.mrf.mxu0
        %v1983 = vpop.f32.mrf.mxu0
        %v1984 = vadd.f32 %v1808, %v1983
        %v1985 = vpop.f32.mrf.mxu0
        %1986 = vmatprep.mubr.bf16.mxu0 %v469
        %1987 = vmatmul.mubr.bf16.gmra.mxu0 %v468
        %v1988 = vpop.f32.mrf.mxu0
        %v1989 = vadd.f32 %v1808, %v1988
        %v1990 = vpop.f32.mrf.mxu0
        %v1991 = vpop.f32.mrf.mxu0
        %v1992 = vadd.f32 %v1808, %v1991
        %v1993 = vpop.f32.mrf.mxu0
        %1994 = vmatprep.mubr.bf16.mxu0 %v471
        %1995 = vmatmul.mubr.bf16.gmra.mxu0 %v470
        %v1996 = vpop.f32.mrf.mxu0
        %v1997 = vadd.f32 %v1808, %v1996
        %v1998 = vpop.f32.mrf.mxu0
        %v1999 = vpop.f32.mrf.mxu0
        %v2000 = vadd.f32 %v1808, %v1999
        %v2001 = vpop.f32.mrf.mxu0
        %2002 = vdwg.mxu0
        %v2003 = vmax.f32 %v1941, 0.0
        %v2004 = vmax.f32 %v1944, 0.0
        %v2005 = vmax.f32 %v1949, 0.0
        %v2006 = vmax.f32 %v1952, 0.0
        %v2007 = vmax.f32 %v1957, 0.0
        %v2008 = vmax.f32 %v1960, 0.0
        %v2009 = vmax.f32 %v1965, 0.0
        %v2010 = vmax.f32 %v1968, 0.0
        %v2011 = vmax.f32 %v1973, 0.0
        %v2012 = vmax.f32 %v1976, 0.0
        %v2013 = vmax.f32 %v1981, 0.0
        %v2014 = vmax.f32 %v1984, 0.0
        %v2015 = vmax.f32 %v1989, 0.0
        %v2016 = vmax.f32 %v1992, 0.0
        %v2017 = vmax.f32 %v1997, 0.0
        %v2018 = vmax.f32 %v2000, 0.0
        %v2019 = vpack.c.bf16 %v2004, %v2003
        %v2020 = vpack.c.bf16 %v2006, %v2005
        %v2021 = vpack.c.bf16 %v2008, %v2007
        %v2022 = vpack.c.bf16 %v2010, %v2009
        %v2023 = vpack.c.bf16 %v2012, %v2011
        %v2024 = vpack.c.bf16 %v2014, %v2013
        %v2025 = vpack.c.bf16 %v2016, %v2015
        %v2026 = vpack.c.bf16 %v2018, %v2017
        %v2035 = vunpack.c.l.b16 %v2019
        %v2036 = vunpack.c.h.b16 %v2019
        %v2037 = vunpack.c.l.b16 %v2020
        %v2038 = vunpack.c.h.b16 %v2020
        %v2039 = vunpack.c.l.b16 %v2021
        %v2040 = vunpack.c.h.b16 %v2021
        %v2041 = vunpack.c.l.b16 %v2022
        %v2042 = vunpack.c.h.b16 %v2022
        %v2043 = vunpack.c.l.b16 %v2023
        %v2044 = vunpack.c.h.b16 %v2023
        %v2045 = vunpack.c.l.b16 %v2024
        %v2046 = vunpack.c.h.b16 %v2024
        %v2047 = vunpack.c.l.b16 %v2025
        %v2048 = vunpack.c.h.b16 %v2025
        %v2049 = vunpack.c.l.b16 %v2026
        %v2050 = vunpack.c.h.b16 %v2026
        %v2051 = vpack.c.b16 %v2035, %v2035
        %v2052 = vpack.c.b16 %v2036, %v2036
        %v2053 = vpack.c.b16 %v2037, %v2037
        %v2054 = vpack.c.b16 %v2038, %v2038
        %v2055 = vpack.c.b16 %v2039, %v2039
        %v2056 = vpack.c.b16 %v2040, %v2040
        %v2057 = vpack.c.b16 %v2041, %v2041
        %v2058 = vpack.c.b16 %v2042, %v2042
        %v2059 = vpack.c.b16 %v2043, %v2043
        %v2060 = vpack.c.b16 %v2044, %v2044
        %v2061 = vpack.c.b16 %v2045, %v2045
        %v2062 = vpack.c.b16 %v2046, %v2046
        %v2063 = vpack.c.b16 %v2047, %v2047
        %v2064 = vpack.c.b16 %v2048, %v2048
        %v2065 = vpack.c.b16 %v2049, %v2049
        %v2066 = vpack.c.b16 %v2050, %v2050
        %2083 = vst [vmem:[%s342] sm:$0xf] %v2051
        %2084 = vst [vmem:[%s342 + $0x4] sm:$0xf] %v2052
        %2085 = vst [vmem:[%s342 + $0x8] sm:$0xf] %v2053
        %2086 = vst [vmem:[%s342 + $0xc] sm:$0xf] %v2054
        %2087 = vst [vmem:[%s342 + $0x10] sm:$0xf] %v2055
        %2088 = vst [vmem:[%s342 + $0x14] sm:$0xf] %v2056
        %2089 = vst [vmem:[%s342 + $0x18] sm:$0xf] %v2057
        %2090 = vst [vmem:[%s342 + $0x1c] sm:$0xf] %v2058
        %2091 = vst [vmem:[%s342 + $0x20] sm:$0xf] %v2059
        %2092 = vst [vmem:[%s342 + $0x24] sm:$0xf] %v2060
        %2093 = vst [vmem:[%s342 + $0x28] sm:$0xf] %v2061
        %2094 = vst [vmem:[%s342 + $0x2c] sm:$0xf] %v2062
        %2095 = vst [vmem:[%s342 + $0x30] sm:$0xf] %v2063
        %2096 = vst [vmem:[%s342 + $0x34] sm:$0xf] %v2064
        %2097 = vst [vmem:[%s342 + $0x38] sm:$0xf] %v2065
        %2098 = vst [vmem:[%s342 + $0x3c] sm:$0xf] %v2066
        %s2099 = scalar_lea.vmem [#allocation5], 640
        %v2100 = vld [vmem:[%s2099] sm:$0xf]
        %v2101 = vld [vmem:[%s2099 + $0x4] sm:$0xf]
        %v2102 = vld [vmem:[%s2099 + $0x8] sm:$0xf]
        %v2103 = vld [vmem:[%s2099 + $0xc] sm:$0xf]
        %v2104 = vld [vmem:[%s2099 + $0x10] sm:$0xf]
        %v2105 = vld [vmem:[%s2099 + $0x14] sm:$0xf]
        %v2106 = vld [vmem:[%s2099 + $0x18] sm:$0xf]
        %v2107 = vld [vmem:[%s2099 + $0x1c] sm:$0xf]
        %v2108 = vld [vmem:[%s2099 + $0x20] sm:$0xf]
        %v2109 = vld [vmem:[%s2099 + $0x24] sm:$0xf]
        %v2110 = vld [vmem:[%s2099 + $0x28] sm:$0xf]
        %v2111 = vld [vmem:[%s2099 + $0x2c] sm:$0xf]
        %v2112 = vld [vmem:[%s2099 + $0x30] sm:$0xf]
        %v2113 = vld [vmem:[%s2099 + $0x34] sm:$0xf]
        %v2114 = vld [vmem:[%s2099 + $0x38] sm:$0xf]
        %v2115 = vld [vmem:[%s2099 + $0x3c] sm:$0xf]
        %v2116 = vld [vmem:[%s2099 + $0x40] sm:$0xf]
        %v2117 = vld [vmem:[%s2099 + $0x44] sm:$0xf]
        %v2118 = vld [vmem:[%s2099 + $0x48] sm:$0xf]
        %v2119 = vld [vmem:[%s2099 + $0x4c] sm:$0xf]
        %v2120 = vld [vmem:[%s2099 + $0x50] sm:$0xf]
        %v2121 = vld [vmem:[%s2099 + $0x54] sm:$0xf]
        %v2122 = vld [vmem:[%s2099 + $0x58] sm:$0xf]
        %v2123 = vld [vmem:[%s2099 + $0x5c] sm:$0xf]
        %v2124 = vld [vmem:[%s2099 + $0x60] sm:$0xf]
        %v2125 = vld [vmem:[%s2099 + $0x64] sm:$0xf]
        %v2126 = vld [vmem:[%s2099 + $0x68] sm:$0xf]
        %v2127 = vld [vmem:[%s2099 + $0x6c] sm:$0xf]
        %v2128 = vld [vmem:[%s2099 + $0x70] sm:$0xf]
        %v2129 = vld [vmem:[%s2099 + $0x74] sm:$0xf]
        %v2130 = vld [vmem:[%s2099 + $0x78] sm:$0xf]
        %v2131 = vld [vmem:[%s2099 + $0x7c] sm:$0xf]
        %s2132 = scalar_lea.vmem [#allocation7], 5
        %v2133 = vld [vmem:[%s2132] sm:$0x1]
        %v2135 = vlaneseq
        %v2136 = vshrl.u32 %v2135, 7
        %v2137 = vsub.s32 0, %v2136
        %v2138 = vrot.slane %v2133, %v2137
        %v2172 = vunpack.c.l.b16 %v2100
        %v2173 = vunpack.c.l.b16 %v2101
        %v2174 = vunpack.c.l.b16 %v2102
        %v2175 = vunpack.c.l.b16 %v2103
        %v2176 = vunpack.c.l.b16 %v2104
        %v2177 = vunpack.c.l.b16 %v2105
        %v2178 = vunpack.c.l.b16 %v2106
        %v2179 = vunpack.c.l.b16 %v2107
        %v2180 = vunpack.c.l.b16 %v2108
        %v2181 = vunpack.c.l.b16 %v2109
        %v2182 = vunpack.c.l.b16 %v2110
        %v2183 = vunpack.c.l.b16 %v2111
        %v2184 = vunpack.c.l.b16 %v2112
        %v2185 = vunpack.c.l.b16 %v2113
        %v2186 = vunpack.c.l.b16 %v2114
        %v2187 = vunpack.c.l.b16 %v2115
        %v2188 = vunpack.c.l.b16 %v2116
        %v2189 = vunpack.c.l.b16 %v2117
        %v2190 = vunpack.c.l.b16 %v2118
        %v2191 = vunpack.c.l.b16 %v2119
        %v2192 = vunpack.c.l.b16 %v2120
        %v2193 = vunpack.c.l.b16 %v2121
        %v2194 = vunpack.c.l.b16 %v2122
        %v2195 = vunpack.c.l.b16 %v2123
        %v2196 = vunpack.c.l.b16 %v2124
        %v2197 = vunpack.c.l.b16 %v2125
        %v2198 = vunpack.c.l.b16 %v2126
        %v2199 = vunpack.c.l.b16 %v2127
        %v2200 = vunpack.c.l.b16 %v2128
        %v2201 = vunpack.c.l.b16 %v2129
        %v2202 = vunpack.c.l.b16 %v2130
        %v2203 = vunpack.c.l.b16 %v2131
        %v2204 = vpack.c.b16 %v2173, %v2172
        %v2205 = vpack.c.b16 %v2175, %v2174
        %v2206 = vpack.c.b16 %v2177, %v2176
        %v2207 = vpack.c.b16 %v2179, %v2178
        %v2208 = vpack.c.b16 %v2181, %v2180
        %v2209 = vpack.c.b16 %v2183, %v2182
        %v2210 = vpack.c.b16 %v2185, %v2184
        %v2211 = vpack.c.b16 %v2187, %v2186
        %v2212 = vpack.c.b16 %v2189, %v2188
        %v2213 = vpack.c.b16 %v2191, %v2190
        %v2214 = vpack.c.b16 %v2193, %v2192
        %v2215 = vpack.c.b16 %v2195, %v2194
        %v2216 = vpack.c.b16 %v2197, %v2196
        %v2217 = vpack.c.b16 %v2199, %v2198
        %v2218 = vpack.c.b16 %v2201, %v2200
        %v2219 = vpack.c.b16 %v2203, %v2202
        %2236 = vmatprep.subr.bf16.mxu0 0
        %2237 = vmatpush1.bf16.msra.mxu0 %v2211
        %2238 = vmatprep.subr.bf16.mxu0 0
        %2239 = vmatpush1.bf16.msra.mxu0 %v2210
        %2240 = vmatprep.subr.bf16.mxu0 0
        %2241 = vmatpush1.bf16.msra.mxu0 %v2209
        %2242 = vmatprep.subr.bf16.mxu0 0
        %2243 = vmatpush1.bf16.msra.mxu0 %v2208
        %2244 = vmatprep.subr.bf16.mxu0 0
        %2245 = vmatpush1.bf16.msra.mxu0 %v2207
        %2246 = vmatprep.subr.bf16.mxu0 0
        %2247 = vmatpush1.bf16.msra.mxu0 %v2206
        %2248 = vmatprep.subr.bf16.mxu0 0
        %2249 = vmatpush1.bf16.msra.mxu0 %v2205
        %2250 = vmatprep.subr.bf16.mxu0 0
        %2251 = vmatpush1.bf16.msra.mxu0 %v2204
        %2252 = vmatprep.subr.bf16.mxu0 0
        %2253 = vmatpush2.bf16.msra.mxu0 %v2219
        %2254 = vmatprep.subr.bf16.mxu0 0
        %2255 = vmatpush2.bf16.msra.mxu0 %v2218
        %2256 = vmatprep.subr.bf16.mxu0 0
        %2257 = vmatpush2.bf16.msra.mxu0 %v2217
        %2258 = vmatprep.subr.bf16.mxu0 0
        %2259 = vmatpush2.bf16.msra.mxu0 %v2216
        %2260 = vmatprep.subr.bf16.mxu0 0
        %2261 = vmatpush2.bf16.msra.mxu0 %v2215
        %2262 = vmatprep.subr.bf16.mxu0 0
        %2263 = vmatpush2.bf16.msra.mxu0 %v2214
        %2264 = vmatprep.subr.bf16.mxu0 0
        %2265 = vmatpush2.bf16.msra.mxu0 %v2213
        %2266 = vmatprep.subr.bf16.mxu0 0
        %2267 = vmatpush2.bf16.msra.mxu0 %v2212
        %2268 = vmatprep.mubr.bf16.mxu0 %v457
        %2269 = vmatmul.mubr.bf16.gmra.mxu0 %v456
        %v2270 = vpop.f32.mrf.mxu0
        %v2271 = vadd.f32 %v2138, %v2270
        %v2272 = vpop.f32.mrf.mxu0
        %v2273 = vpop.f32.mrf.mxu0
        %v2274 = vadd.f32 %v2138, %v2273
        %v2275 = vpop.f32.mrf.mxu0
        %2276 = vmatprep.mubr.bf16.mxu0 %v459
        %2277 = vmatmul.mubr.bf16.gmra.mxu0 %v458
        %v2278 = vpop.f32.mrf.mxu0
        %v2279 = vadd.f32 %v2138, %v2278
        %v2280 = vpop.f32.mrf.mxu0
        %v2281 = vpop.f32.mrf.mxu0
        %v2282 = vadd.f32 %v2138, %v2281
        %v2283 = vpop.f32.mrf.mxu0
        %2284 = vmatprep.mubr.bf16.mxu0 %v461
        %2285 = vmatmul.mubr.bf16.gmra.mxu0 %v460
        %v2286 = vpop.f32.mrf.mxu0
        %v2287 = vadd.f32 %v2138, %v2286
        %v2288 = vpop.f32.mrf.mxu0
        %v2289 = vpop.f32.mrf.mxu0
        %v2290 = vadd.f32 %v2138, %v2289
        %v2291 = vpop.f32.mrf.mxu0
        %2292 = vmatprep.mubr.bf16.mxu0 %v463
        %2293 = vmatmul.mubr.bf16.gmra.mxu0 %v462
        %v2294 = vpop.f32.mrf.mxu0
        %v2295 = vadd.f32 %v2138, %v2294
        %v2296 = vpop.f32.mrf.mxu0
        %v2297 = vpop.f32.mrf.mxu0
        %v2298 = vadd.f32 %v2138, %v2297
        %v2299 = vpop.f32.mrf.mxu0
        %2300 = vmatprep.mubr.bf16.mxu0 %v465
        %2301 = vmatmul.mubr.bf16.gmra.mxu0 %v464
        %v2302 = vpop.f32.mrf.mxu0
        %v2303 = vadd.f32 %v2138, %v2302
        %v2304 = vpop.f32.mrf.mxu0
        %v2305 = vpop.f32.mrf.mxu0
        %v2306 = vadd.f32 %v2138, %v2305
        %v2307 = vpop.f32.mrf.mxu0
        %2308 = vmatprep.mubr.bf16.mxu0 %v467
        %2309 = vmatmul.mubr.bf16.gmra.mxu0 %v466
        %v2310 = vpop.f32.mrf.mxu0
        %v2311 = vadd.f32 %v2138, %v2310
        %v2312 = vpop.f32.mrf.mxu0
        %v2313 = vpop.f32.mrf.mxu0
        %v2314 = vadd.f32 %v2138, %v2313
        %v2315 = vpop.f32.mrf.mxu0
        %2316 = vmatprep.mubr.bf16.mxu0 %v469
        %2317 = vmatmul.mubr.bf16.gmra.mxu0 %v468
        %v2318 = vpop.f32.mrf.mxu0
        %v2319 = vadd.f32 %v2138, %v2318
        %v2320 = vpop.f32.mrf.mxu0
        %v2321 = vpop.f32.mrf.mxu0
        %v2322 = vadd.f32 %v2138, %v2321
        %v2323 = vpop.f32.mrf.mxu0
        %2324 = vmatprep.mubr.bf16.mxu0 %v471
        %2325 = vmatmul.mubr.bf16.gmra.mxu0 %v470
        %v2326 = vpop.f32.mrf.mxu0
        %v2327 = vadd.f32 %v2138, %v2326
        %v2328 = vpop.f32.mrf.mxu0
        %v2329 = vpop.f32.mrf.mxu0
        %v2330 = vadd.f32 %v2138, %v2329
        %v2331 = vpop.f32.mrf.mxu0
        %2332 = vdwg.mxu0
        %v2333 = vmax.f32 %v2271, 0.0
        %v2334 = vmax.f32 %v2274, 0.0
        %v2335 = vmax.f32 %v2279, 0.0
        %v2336 = vmax.f32 %v2282, 0.0
        %v2337 = vmax.f32 %v2287, 0.0
        %v2338 = vmax.f32 %v2290, 0.0
        %v2339 = vmax.f32 %v2295, 0.0
        %v2340 = vmax.f32 %v2298, 0.0
        %v2341 = vmax.f32 %v2303, 0.0
        %v2342 = vmax.f32 %v2306, 0.0
        %v2343 = vmax.f32 %v2311, 0.0
        %v2344 = vmax.f32 %v2314, 0.0
        %v2345 = vmax.f32 %v2319, 0.0
        %v2346 = vmax.f32 %v2322, 0.0
        %v2347 = vmax.f32 %v2327, 0.0
        %v2348 = vmax.f32 %v2330, 0.0
        %v2349 = vpack.c.bf16 %v2334, %v2333
        %v2350 = vpack.c.bf16 %v2336, %v2335
        %v2351 = vpack.c.bf16 %v2338, %v2337
        %v2352 = vpack.c.bf16 %v2340, %v2339
        %v2353 = vpack.c.bf16 %v2342, %v2341
        %v2354 = vpack.c.bf16 %v2344, %v2343
        %v2355 = vpack.c.bf16 %v2346, %v2345
        %v2356 = vpack.c.bf16 %v2348, %v2347
        %v2365 = vunpack.c.l.b16 %v2349
        %v2366 = vunpack.c.h.b16 %v2349
        %v2367 = vunpack.c.l.b16 %v2350
        %v2368 = vunpack.c.h.b16 %v2350
        %v2369 = vunpack.c.l.b16 %v2351
        %v2370 = vunpack.c.h.b16 %v2351
        %v2371 = vunpack.c.l.b16 %v2352
        %v2372 = vunpack.c.h.b16 %v2352
        %v2373 = vunpack.c.l.b16 %v2353
        %v2374 = vunpack.c.h.b16 %v2353
        %v2375 = vunpack.c.l.b16 %v2354
        %v2376 = vunpack.c.h.b16 %v2354
        %v2377 = vunpack.c.l.b16 %v2355
        %v2378 = vunpack.c.h.b16 %v2355
        %v2379 = vunpack.c.l.b16 %v2356
        %v2380 = vunpack.c.h.b16 %v2356
        %v2381 = vpack.c.b16 %v2365, %v2365
        %v2382 = vpack.c.b16 %v2366, %v2366
        %v2383 = vpack.c.b16 %v2367, %v2367
        %v2384 = vpack.c.b16 %v2368, %v2368
        %v2385 = vpack.c.b16 %v2369, %v2369
        %v2386 = vpack.c.b16 %v2370, %v2370
        %v2387 = vpack.c.b16 %v2371, %v2371
        %v2388 = vpack.c.b16 %v2372, %v2372
        %v2389 = vpack.c.b16 %v2373, %v2373
        %v2390 = vpack.c.b16 %v2374, %v2374
        %v2391 = vpack.c.b16 %v2375, %v2375
        %v2392 = vpack.c.b16 %v2376, %v2376
        %v2393 = vpack.c.b16 %v2377, %v2377
        %v2394 = vpack.c.b16 %v2378, %v2378
        %v2395 = vpack.c.b16 %v2379, %v2379
        %v2396 = vpack.c.b16 %v2380, %v2380
        %s2413 = scalar_lea.vmem %s342, 64 [#allocation11]
        %2414 = vst [vmem:[%s2413] sm:$0xf] %v2381
        %2415 = vst [vmem:[%s2413 + $0x4] sm:$0xf] %v2382
        %2416 = vst [vmem:[%s2413 + $0x8] sm:$0xf] %v2383
        %2417 = vst [vmem:[%s2413 + $0xc] sm:$0xf] %v2384
        %2418 = vst [vmem:[%s2413 + $0x10] sm:$0xf] %v2385
        %2419 = vst [vmem:[%s2413 + $0x14] sm:$0xf] %v2386
        %2420 = vst [vmem:[%s2413 + $0x18] sm:$0xf] %v2387
        %2421 = vst [vmem:[%s2413 + $0x1c] sm:$0xf] %v2388
        %2422 = vst [vmem:[%s2413 + $0x20] sm:$0xf] %v2389
        %2423 = vst [vmem:[%s2413 + $0x24] sm:$0xf] %v2390
        %2424 = vst [vmem:[%s2413 + $0x28] sm:$0xf] %v2391
        %2425 = vst [vmem:[%s2413 + $0x2c] sm:$0xf] %v2392
        %2426 = vst [vmem:[%s2413 + $0x30] sm:$0xf] %v2393
        %2427 = vst [vmem:[%s2413 + $0x34] sm:$0xf] %v2394
        %2428 = vst [vmem:[%s2413 + $0x38] sm:$0xf] %v2395
        %2429 = vst [vmem:[%s2413 + $0x3c] sm:$0xf] %v2396
        %s2430 = sand.u32 %s138, 1
        %s2431 = scalar_lea.sflag [#allocation4], %s2430
        %s2432 = sand.u32 %s138, 1
        %s2433 = smul.addr %s2432, 128
        %s2434 = scalar_lea.vmem [#allocation8], %s2433
        %s2435 = sand.u32 %s27, 1
        %s2436 = scalar_lea.sflag [#allocation10], %s2435
        %s2437 = sand.u32 %s168, 1
        %s2438 = smul.addr %s2437, 128
        %s2439 = scalar_lea.vmem [#allocation9], %s2438
        %s2440 = sand.u32 %s27, 1
        %s2441 = scalar_lea.sflag [#allocation10], %s2440
        %s2442 = sand.u32 %s198, 1
        %s2443 = smul.addr %s2442, 128
        %s2444 = scalar_lea.vmem [#allocation11], %s2443
        // Predicated region
        $region45: #{tpu_custom_call.1} parent=31 // pred_check
          %p2445 = pneg %p148
        $region46: #{tpu_custom_call.1} parent=31 // pred_check_branch
          %2447 = sbr.rel (%p2445) target = $region48
        $region47: #{tpu_custom_call.1} parent=31 // pred_region
          #allocation13 [shape = 'u32[6]{0}', space=smem, size = 0x18, scoped, tag = 'DMA stride descriptor']
          %s2448 = smul.u32 2, %s34
          %s2449 = smul.u32 16, %s33
          %s2451 = ssub.s32 2048, 2048
          %2452 = vsyncadd %s2431, %s2451
          %s2453 = smul.addr %s2448, 32
          %s2454 = sadd.s32 %s2449, %s2453
          %s2455 = smul.addr %s32, 64
          %s2456 = sadd.s32 %s2454, %s2455
          %s2457 = smul.addr %s2456, 64
          %s2458 = scalar_lea.hbm %s3, %s2457
          %s2460 = sshll.u32 1, 14
          %s2461 = sxor.u32 4294967295, %s2460
          %s2464 = sshll.u32 7, 18
          %s2465 = sxor.u32 4294967295, %s2464
          %s2466 = sand.u32 0, %s2465
          %s2468 = sor.u32 %s2466, 0
          %s2469 = sshll.u32 %s2434, 4
          %s2470 = int_to_ptr.vmem [resolvable:$true] %s2469
          %2476 = sst [smem:[#allocation13]] 1024
          %s2477 = scalar_lea.smem [#allocation13], 1
          %2478 = sst [smem:[%s2477]] 2048
          %s2479 = scalar_lea.smem [#allocation13], 2
          %2480 = sst [smem:[%s2479]] 16
          %s2481 = scalar_lea.smem [#allocation13], 3
          %2482 = sst [smem:[%s2481]] 64
          %s2483 = scalar_lea.smem [#allocation13], 4
          %2484 = sst [smem:[%s2483]] 64
          %s2485 = scalar_lea.smem [#allocation13], 5
          %2486 = sst [smem:[%s2485]] 4
          %2488 = dma.general %s2470, 2048, %s2458, %s2431, 131072, [#allocation13], %s2468, 0
        $region48: #{tpu_custom_call.1} parent=31 // pred_fallthru
          _
        // Predicated region
        $region49: #{tpu_custom_call.1} parent=31 // pred_check
          %p2489 = pneg %p178
        $region50: #{tpu_custom_call.1} parent=31 // pred_check_branch
          %2491 = sbr.rel (%p2489) target = $region52
        $region51: #{tpu_custom_call.1} parent=31 // pred_region
          #allocation15 [shape = 'u32[6]{0}', space=smem, size = 0x18, scoped, tag = 'DMA stride descriptor']
          %s2492 = smul.u32 2, %s34
          %s2493 = smul.u32 16, %s33
          %s2495 = ssub.s32 2048, 2048
          %2496 = vsyncadd %s2436, %s2495
          %s2497 = smul.addr %s2492, 32
          %s2498 = sadd.s32 %s2493, %s2497
          %s2499 = smul.addr %s32, 64
          %s2500 = sadd.s32 %s2498, %s2499
          %s2501 = smul.addr %s2500, 64
          %s2502 = scalar_lea.hbm %s4, %s2501
          %s2504 = sshll.u32 1, 14
          %s2505 = sxor.u32 4294967295, %s2504
          %s2508 = sshll.u32 7, 18
          %s2509 = sxor.u32 4294967295, %s2508
          %s2510 = sand.u32 0, %s2509
          %s2512 = sor.u32 %s2510, 0
          %s2513 = sshll.u32 %s2439, 4
          %s2514 = int_to_ptr.vmem [resolvable:$true] %s2513
          %2520 = sst [smem:[#allocation15]] 1024
          %s2521 = scalar_lea.smem [#allocation15], 1
          %2522 = sst [smem:[%s2521]] 2048
          %s2523 = scalar_lea.smem [#allocation15], 2
          %2524 = sst [smem:[%s2523]] 16
          %s2525 = scalar_lea.smem [#allocation15], 3
          %2526 = sst [smem:[%s2525]] 64
          %s2527 = scalar_lea.smem [#allocation15], 4
          %2528 = sst [smem:[%s2527]] 64
          %s2529 = scalar_lea.smem [#allocation15], 5
          %2530 = sst [smem:[%s2529]] 4
          %2532 = dma.general %s2514, 2048, %s2502, %s2436, 131072, [#allocation15], %s2512, 0
        $region52: #{tpu_custom_call.1} parent=31 // pred_fallthru
          _
        // Predicated region
        $region53: #{tpu_custom_call.1} parent=31 // pred_check
          %p2533 = pneg %p208
        $region54: #{tpu_custom_call.1} parent=31 // pred_check_branch
          %2535 = sbr.rel (%p2533) target = $region56
        $region55: #{tpu_custom_call.1} parent=31 // pred_region
          #allocation17 [shape = 'u32[6]{0}', space=smem, size = 0x18, scoped, tag = 'DMA stride descriptor']
          %s2536 = smul.u32 2, %s34
          %s2537 = smul.u32 16, %s33
          %s2539 = ssub.s32 2048, 2048
          %2540 = vsyncadd %s2441, %s2539
          %s2541 = smul.addr %s2536, 32
          %s2542 = sadd.s32 %s2537, %s2541
          %s2543 = smul.addr %s32, 64
          %s2544 = sadd.s32 %s2542, %s2543
          %s2545 = smul.addr %s2544, 64
          %s2546 = scalar_lea.hbm %s5, %s2545
          %s2548 = sshll.u32 1, 14
          %s2549 = sxor.u32 4294967295, %s2548
          %s2552 = sshll.u32 7, 18
          %s2553 = sxor.u32 4294967295, %s2552
          %s2554 = sand.u32 0, %s2553
          %s2556 = sor.u32 %s2554, 0
          %s2557 = sshll.u32 %s2444, 4
          %s2558 = int_to_ptr.vmem [resolvable:$true] %s2557
          %2564 = sst [smem:[#allocation17]] 1024
          %s2565 = scalar_lea.smem [#allocation17], 1
          %2566 = sst [smem:[%s2565]] 2048
          %s2567 = scalar_lea.smem [#allocation17], 2
          %2568 = sst [smem:[%s2567]] 16
          %s2569 = scalar_lea.smem [#allocation17], 3
          %2570 = sst [smem:[%s2569]] 64
          %s2571 = scalar_lea.smem [#allocation17], 4
          %2572 = sst [smem:[%s2571]] 64
          %s2573 = scalar_lea.smem [#allocation17], 5
          %2574 = sst [smem:[%s2573]] 4
          %2576 = dma.general %s2558, 2048, %s2546, %s2441, 131072, [#allocation17], %s2556, 0
        $region56: #{tpu_custom_call.1} parent=31 // pred_fallthru
          _
      $region32: #{tpu_custom_call.1} parent=5 // pred_fallthru
        _
      %p2577 = scmp.le.s32.totalorder 2, %s22
      // Predicated region
      $region57: #{tpu_custom_call.1} parent=5 // pred_check
        %p2578 = pneg %p2577
      $region58: #{tpu_custom_call.1} parent=5 // pred_check_branch
        %2580 = sbr.rel (%p2578) target = $region60
      $region59: #{tpu_custom_call.1} parent=5 // pred_region
        %s2581 = ssub.s32 %s22, 2
        // Predicated region
        $region61: #{tpu_custom_call.1} parent=59 // pred_check
          %p2582 = pneg %p154
        $region62: #{tpu_custom_call.1} parent=59 // pred_check_branch
          %2584 = sbr.rel (%p2582) target = $region64
        $region63: #{tpu_custom_call.1} parent=59 // pred_region
          %s2585 = sand.u32 %s139, 1
          %s2586 = scalar_lea.sflag [#allocation4], %s2585
          %s2587 = sand.u32 %s139, 1
          %s2588 = smul.addr %s2587, 128
          %s2589 = scalar_lea.vmem [#allocation8], %s2588
          %2590 = dma.done %s2586, 2048
        $region64: #{tpu_custom_call.1} parent=59 // pred_fallthru
          _
        // Predicated region
        $region65: #{tpu_custom_call.1} parent=59 // pred_check
          %p2591 = pneg %p184
        $region66: #{tpu_custom_call.1} parent=59 // pred_check_branch
          %2593 = sbr.rel (%p2591) target = $region68
        $region67: #{tpu_custom_call.1} parent=59 // pred_region
          %s2594 = sand.u32 %s28, 1
          %s2595 = scalar_lea.sflag [#allocation10], %s2594
          %s2596 = sand.u32 %s169, 1
          %s2597 = smul.addr %s2596, 128
          %s2598 = scalar_lea.vmem [#allocation9], %s2597
          %2599 = dma.done %s2595, 2048
        $region68: #{tpu_custom_call.1} parent=59 // pred_fallthru
          _
        // Predicated region
        $region69: #{tpu_custom_call.1} parent=59 // pred_check
          %p2600 = pneg %p214
        $region70: #{tpu_custom_call.1} parent=59 // pred_check_branch
          %2602 = sbr.rel (%p2600) target = $region72
        $region71: #{tpu_custom_call.1} parent=59 // pred_region
          %s2603 = sand.u32 %s28, 1
          %s2604 = scalar_lea.sflag [#allocation10], %s2603
          %s2605 = sand.u32 %s199, 1
          %s2606 = smul.addr %s2605, 128
          %s2607 = scalar_lea.vmem [#allocation11], %s2606
          %2608 = dma.done %s2604, 2048
        $region72: #{tpu_custom_call.1} parent=59 // pred_fallthru
          _
      $region60: #{tpu_custom_call.1} parent=5 // pred_fallthru
        _
    $region6: #{tpu_custom_call.1} parent=1 // loop_footer
      %s26 = sadd.s32 1, %s22
    $region7: #{tpu_custom_call.1} parent=1 // loop_footer_branch
      %21 = sbr.rel target = $region3
    $region8: #{tpu_custom_call.1} parent=1 // loop_exit
      _
    %2609 = vsyncpa [#allocation3], 1
    %s2610 = scalar_lea.sflag [#allocation3], 1
    %2611 = vsyncpa %s2610, 1
    %2612 = vsyncpa [#allocation6], 1
    %2613 = vsyncpa [#allocation4], 1
    %s2614 = scalar_lea.sflag [#allocation4], 1
    %2615 = vsyncpa %s2614, 1
    %2616 = vsyncpa [#allocation10], 1
    %s2617 = scalar_lea.sflag [#allocation10], 1
    %2618 = vsyncpa %s2617, 1

</llo_original>
